<compile_context>
chip_gen: v6e
topology: v6e:2x2x1
jax: 0.10.0
libtpu: 0.0.40
codegen_flags: <defaults>
</compile_context>

<pallas_src>
import functools

import jax
import jax.numpy as jnp
from jax.experimental import pallas as pl
from jax.experimental.pallas import tpu as pltpu

KH = KW = 3
BN_EPS = 1e-5
MXU_DTYPE = jnp.bfloat16    # MXU operands; all elementwise math stays f32


def _conv_one_image(x_img, w2, H, W):
    """3x3 conv of one zero-padded flattened image as a single im2col MXU matmul.

    x_img: (Cin, Lpp) bf16, Lpp = (H+2)*(W+2) + 2 (2 trailing zero columns)
    w2:    (Cout, 9*Cin) bf16, tap-major (dh, dw, ci)
    returns (Cout, H*(W+2)) f32; columns with (col % (W+2)) >= W are row-wrap junk.
    """
    Wp = W + 2
    Lc = H * Wp
    taps = []
    for dh in range(KH):
        for dw in range(KW):
            s = dh * Wp + dw
            taps.append(x_img[:, s:s + Lc])            # (Cin, Lc), in-bounds: s+Lc <= Lpp
    patch = jnp.concatenate(taps, axis=0)              # (9*Cin, Lc)
    return jnp.dot(w2, patch, preferred_element_type=jnp.float32)   # (Cout, Lc) f32


def _conv_stats_kernel(x_ref, w2_ref, mask_ref, stats_ref, *, H, W, B):
    """Pass 1: conv + per-step per-channel (sum, sumsq) over valid pixels only.

    x_ref:     (B, Cin, Lpp) bf16
    w2_ref:    (Cout, 9*Cin) bf16
    mask_ref:  (1, Lc) f32, 1.0 on valid columns, 0.0 on row-wrap columns
    stats_ref: (1, Cout, 2) f32  -- [:, :, 0] = sum, [:, :, 1] = sum of squares
    """
    w2 = w2_ref[...]
    valid = mask_ref[...]                              # (1, Lc)
    acc_s = None
    acc_q = None
    for b in range(B):
        conv = _conv_one_image(x_ref[b], w2, H, W)     # (Cout, Lc) f32
        cm = conv * valid
        s = jnp.sum(cm, axis=1, keepdims=True)         # (Cout, 1)
        q = jnp.sum(cm * cm, axis=1, keepdims=True)    # (Cout, 1)
        acc_s = s if acc_s is None else acc_s + s
        acc_q = q if acc_q is None else acc_q + q
    stats_ref[0] = jnp.concatenate([acc_s, acc_q], axis=1)   # (Cout, 2)


def _conv_bn_pool_kernel(x_ref, w2_ref, mask_ref, scale_ref, bias_ref, out_ref,
                         *, H, W, B):
    """Pass 2: recompute conv, apply global BN scale/bias, separable 3x3 max pool.

    scale/bias: (Cout, 1) f32 with scale = 1/sqrt(var+eps), bias = -mean*scale
    out_ref:    (B, Cout, Lc) f32 (wrap columns are junk, trimmed in the wrapper)
    """
    Wp = W + 2
    Lc = H * Wp
    Cout = out_ref.shape[1]
    w2 = w2_ref[...]
    valid = mask_ref[...] > 0.5                        # (1, Lc) bool
    scale = scale_ref[...]                             # (Cout, 1)
    bias = bias_ref[...]                               # (Cout, 1)
    neg1 = jnp.full((Cout, 1), -jnp.inf, dtype=jnp.float32)
    negw = jnp.full((Cout, Wp), -jnp.inf, dtype=jnp.float32)
    for b in range(B):
        conv = _conv_one_image(x_ref[b], w2, H, W)     # (Cout, Lc) f32
        # BatchNorm (affine=False); wrap columns forced to -inf for the pool.
        y = jnp.where(valid, conv * scale + bias, -jnp.inf)
        # Separable 3x3/1/1 max pool, register/VMEM-resident.
        # W direction: -inf wrap columns act as the left/right pool padding.
        yw = jnp.concatenate([neg1, y, neg1], axis=1)                 # (Cout, Lc+2)
        wmax = jnp.maximum(jnp.maximum(yw[:, 0:Lc], yw[:, 1:Lc + 1]),
                           yw[:, 2:Lc + 2])
        # H direction: rows are stride Wp apart in the flat layout.
        rh = jnp.concatenate([negw, wmax, negw], axis=1)              # (Cout, Lc+2Wp)
        out_ref[b] = jnp.maximum(jnp.maximum(rh[:, 0:Lc], rh[:, Wp:Wp + Lc]),
                                 rh[:, 2 * Wp:2 * Wp + Lc])


def _pick_batch_tile(n, max_b=8):
    """Largest divisor of n that is <= max_b (falls back to 1)."""
    for b in range(min(n, max_b), 0, -1):
        if n % b == 0:
            return b
    return 1


@jax.jit
def conv_block(x_nchw, w_oihw):
    """ConvBlock forward. x_nchw: (N, Cin, H, W) f32; w_oihw: (Cout, Cin, 3, 3) f32."""
    N, Cin, H, W = x_nchw.shape
    Cout = w_oihw.shape[0]
    Hp, Wp = H + 2, W + 2
    Lp, Lc = Hp * Wp, H * Wp
    Lpp = Lp + 2                      # 2 extra trailing zeros: all 9 tap slices in-bounds

    B = _pick_batch_tile(N)
    n_steps = N // B

    # Fused zero-pad + flatten + bf16 cast (no layout transpose anywhere).
    x_flat = jnp.pad(x_nchw, ((0, 0), (0, 0), (1, 1), (1, 1))).reshape(N, Cin, Lp)
    x_flat = jnp.pad(x_flat, ((0, 0), (0, 0), (0, 2))).astype(MXU_DTYPE)   # (N,Cin,Lpp)

    # Weights (Cout, Cin, 3, 3) -> (Cout, (dh, dw, ci)) bf16, matching tap concat order.
    w2 = jnp.transpose(w_oihw, (0, 2, 3, 1)).reshape(Cout, KH * KW * Cin).astype(MXU_DTYPE)

    # Valid-column mask over the H*(W+2) conv columns (row-wrap columns -> 0).
    mask = ((jnp.arange(Lc) % Wp) < W).astype(jnp.float32).reshape(1, Lc)

    cparams = pltpu.CompilerParams(
        dimension_semantics=("parallel",),          # v7x: shard batch steps across 2 TCs
        vmem_limit_bytes=32 * 1024 * 1024,          # per-step blocks are a few 10s of KiB
    )

    # -------- Pass 1: per-step per-channel partial BN statistics (no conv HBM write) --
    stats = pl.pallas_call(
        functools.partial(_conv_stats_kernel, H=H, W=W, B=B),
        grid=(n_steps,),
        in_specs=[
            pl.BlockSpec((B, Cin, Lpp), lambda n: (n, 0, 0)),
            pl.BlockSpec((Cout, KH * KW * Cin), lambda n: (0, 0)),
            pl.BlockSpec((1, Lc), lambda n: (0, 0)),
        ],
        out_specs=pl.BlockSpec((1, Cout, 2), lambda n: (n, 0, 0)),
        out_shape=jax.ShapeDtypeStruct((n_steps, Cout, 2), jnp.float32),
        compiler_params=cparams,
    )(x_flat, w2, mask)

    # Global (N,H,W) BatchNorm statistics (training-mode, biased variance); tiny XLA math.
    cnt = float(N * H * W)
    tot = jnp.sum(stats, axis=0)                             # (Cout, 2)
    mean = tot[:, 0:1] / cnt                                 # (Cout, 1)
    var = jnp.maximum(tot[:, 1:2] / cnt - mean * mean, 0.0)  # clamp cancellation noise
    inv = jax.lax.rsqrt(var + BN_EPS)
    scale = inv                                              # (Cout, 1)
    bias = -mean * inv                                       # (Cout, 1)

    # -------- Pass 2: recompute conv, normalize, 3x3/1/1 max pool ----------------------
    out_flat = pl.pallas_call(
        functools.partial(_conv_bn_pool_kernel, H=H, W=W, B=B),
        grid=(n_steps,),
        in_specs=[
            pl.BlockSpec((B, Cin, Lpp), lambda n: (n, 0, 0)),
            pl.BlockSpec((Cout, KH * KW * Cin), lambda n: (0, 0)),
            pl.BlockSpec((1, Lc), lambda n: (0, 0)),
            pl.BlockSpec((Cout, 1), lambda n: (0, 0)),
            pl.BlockSpec((Cout, 1), lambda n: (0, 0)),
        ],
        out_specs=pl.BlockSpec((B, Cout, Lc), lambda n: (n, 0, 0)),
        out_shape=jax.ShapeDtypeStruct((N, Cout, Lc), jnp.float32),
        compiler_params=cparams,
    )(x_flat, w2, mask, scale, bias)

    # Free reshape + cheap slice dropping the 2 wrap columns per row -> NCHW.
    return out_flat.reshape(N, Cout, H, Wp)[:, :, :, :W]


def _reference(x_nchw, w_oihw):
    """Pure-JAX reference matching PyTorch ConvBlock.forward (training-mode BN)."""
    conv = jax.lax.conv_general_dilated(
        x_nchw, w_oihw, window_strides=(1, 1), padding=((1, 1), (1, 1)),
        dimension_numbers=("NCHW", "OIHW", "NCHW"))
    mean = conv.mean(axis=(0, 2, 3), keepdims=True)
    var = conv.var(axis=(0, 2, 3), keepdims=True)          # biased variance
    bn = (conv - mean) / jnp.sqrt(var + BN_EPS)
    pool = jax.lax.reduce_window(
        bn, -jnp.inf, jax.lax.max,
        window_dimensions=(1, 1, 3, 3), window_strides=(1, 1, 1, 1),
        padding=((0, 0), (0, 0), (1, 1), (1, 1)))
    return pool


if __name__ == "__main__":
    key = jax.random.PRNGKey(0)
    kx, kw = jax.random.split(key)

    N, Cin, Cout, H, W = 2, 4, 8, 16, 16
    x = jax.random.normal(kx, (N, Cin, H, W), dtype=jnp.float32)
    w = 0.1 * jax.random.normal(kw, (Cout, Cin, KH, KW), dtype=jnp.float32)

    out = jax.block_until_ready(conv_block(x, w))
    ref = jax.block_until_ready(_reference(x, w))

    assert out.shape == (N, Cout, H, W), out.shape
    assert jnp.allclose(out, ref, atol=3e-2, rtol=3e-2), float(
        jnp.max(jnp.abs(out - ref)))

    print("KERNEL_OK")
</pallas_src>

<mosaic_0001>
module attributes {stable_mosaic.version = 11 : i64} {
  func.func @_conv_stats_kernel(%arg0: i32, %arg1: memref<2x4x326xbf16, #tpu.memory_space<vmem>>, %arg2: memref<8x36xbf16, #tpu.memory_space<vmem>>, %arg3: memref<1x288xf32, #tpu.memory_space<vmem>>, %arg4: memref<1x8x2xf32, #tpu.memory_space<vmem>>) attributes {dimension_semantics = [#tpu.dimension_semantics<parallel>], iteration_bounds = array<i64: 1>, scalar_prefetch = 0 : i64, scratch_operands = 0 : i64, tpu.core_type = #tpu.core_type<tc>, window_params = [{transform_indices = @transform_0, window_bounds = array<i64: 2, 4, 326>}, {pipeline_mode = #tpu.pipeline_mode<synchronous>, transform_indices = @transform_1, window_bounds = array<i64: 8, 36>}, {pipeline_mode = #tpu.pipeline_mode<synchronous>, transform_indices = @transform_2, window_bounds = array<i64: 1, 288>}, {transform_indices = @transform_3, window_bounds = array<i64: 1, 8, 2>}]} {
    %c0 = arith.constant 0 : index
    %c0_0 = arith.constant 0 : index
    %0 = vector.load %arg2[%c0, %c0_0] : memref<8x36xbf16, #tpu.memory_space<vmem>>, vector<8x36xbf16>
    %c0_1 = arith.constant 0 : index
    %c0_2 = arith.constant 0 : index
    %1 = vector.load %arg3[%c0_1, %c0_2] : memref<1x288xf32, #tpu.memory_space<vmem>>, vector<1x288xf32>
    %c0_3 = arith.constant 0 : index
    %c0_4 = arith.constant 0 : index
    %c0_5 = arith.constant 0 : index
    %2 = vector.load %arg1[%c0_3, %c0_4, %c0_5] : memref<2x4x326xbf16, #tpu.memory_space<vmem>>, vector<1x4x326xbf16>
    %3 = vector.shape_cast %2 : vector<1x4x326xbf16> to vector<4x326xbf16>
    %4 = vector.extract_strided_slice %3 {offsets = [0, 0], sizes = [4, 288], strides = [1, 1]} : vector<4x326xbf16> to vector<4x288xbf16>
    %5 = vector.extract_strided_slice %3 {offsets = [0, 1], sizes = [4, 288], strides = [1, 1]} : vector<4x326xbf16> to vector<4x288xbf16>
    %6 = vector.extract_strided_slice %3 {offsets = [0, 2], sizes = [4, 288], strides = [1, 1]} : vector<4x326xbf16> to vector<4x288xbf16>
    %7 = vector.extract_strided_slice %3 {offsets = [0, 18], sizes = [4, 288], strides = [1, 1]} : vector<4x326xbf16> to vector<4x288xbf16>
    %8 = vector.extract_strided_slice %3 {offsets = [0, 19], sizes = [4, 288], strides = [1, 1]} : vector<4x326xbf16> to vector<4x288xbf16>
    %9 = vector.extract_strided_slice %3 {offsets = [0, 20], sizes = [4, 288], strides = [1, 1]} : vector<4x326xbf16> to vector<4x288xbf16>
    %10 = vector.extract_strided_slice %3 {offsets = [0, 36], sizes = [4, 288], strides = [1, 1]} : vector<4x326xbf16> to vector<4x288xbf16>
    %11 = vector.extract_strided_slice %3 {offsets = [0, 37], sizes = [4, 288], strides = [1, 1]} : vector<4x326xbf16> to vector<4x288xbf16>
    %12 = vector.extract_strided_slice %3 {offsets = [0, 38], sizes = [4, 288], strides = [1, 1]} : vector<4x326xbf16> to vector<4x288xbf16>
    %13 = tpu.concatenate %4, %5, %6, %7, %8, %9, %10, %11, %12 in 0 : vector<4x288xbf16>, vector<4x288xbf16>, vector<4x288xbf16>, vector<4x288xbf16>, vector<4x288xbf16>, vector<4x288xbf16>, vector<4x288xbf16>, vector<4x288xbf16>, vector<4x288xbf16> -> vector<36x288xbf16>
    %cst = arith.constant dense<0.000000e+00> : vector<8x288xf32>
    %14 = tpu.matmul %0, %13, %cst {dimension_numbers = #tpu.dot_dimension_numbers<[1], [0], [0], [1], [0, 0, 1, 1], [], []>} : vector<8x36xbf16>, vector<36x288xbf16>, vector<8x288xf32> -> vector<8x288xf32>
    %15 = vector.broadcast %1 : vector<1x288xf32> to vector<8x288xf32>
    %16 = arith.mulf %14, %15 : vector<8x288xf32>
    %cst_6 = arith.constant dense<0.000000e+00> : vector<8xf32>
    %17 = vector.multi_reduction <add>, %16, %cst_6 [1] : vector<8x288xf32> to vector<8xf32>
    %18 = vector.shape_cast %17 : vector<8xf32> to vector<8x1xf32>
    %19 = arith.mulf %16, %16 : vector<8x288xf32>
    %cst_7 = arith.constant dense<0.000000e+00> : vector<8xf32>
    %20 = vector.multi_reduction <add>, %19, %cst_7 [1] : vector<8x288xf32> to vector<8xf32>
    %21 = vector.shape_cast %20 : vector<8xf32> to vector<8x1xf32>
    %c1 = arith.constant 1 : index
    %c0_8 = arith.constant 0 : index
    %c0_9 = arith.constant 0 : index
    %22 = vector.load %arg1[%c1, %c0_8, %c0_9] : memref<2x4x326xbf16, #tpu.memory_space<vmem>>, vector<1x4x326xbf16>
    %23 = vector.shape_cast %22 : vector<1x4x326xbf16> to vector<4x326xbf16>
    %24 = vector.extract_strided_slice %23 {offsets = [0, 0], sizes = [4, 288], strides = [1, 1]} : vector<4x326xbf16> to vector<4x288xbf16>
    %25 = vector.extract_strided_slice %23 {offsets = [0, 1], sizes = [4, 288], strides = [1, 1]} : vector<4x326xbf16> to vector<4x288xbf16>
    %26 = vector.extract_strided_slice %23 {offsets = [0, 2], sizes = [4, 288], strides = [1, 1]} : vector<4x326xbf16> to vector<4x288xbf16>
    %27 = vector.extract_strided_slice %23 {offsets = [0, 18], sizes = [4, 288], strides = [1, 1]} : vector<4x326xbf16> to vector<4x288xbf16>
    %28 = vector.extract_strided_slice %23 {offsets = [0, 19], sizes = [4, 288], strides = [1, 1]} : vector<4x326xbf16> to vector<4x288xbf16>
    %29 = vector.extract_strided_slice %23 {offsets = [0, 20], sizes = [4, 288], strides = [1, 1]} : vector<4x326xbf16> to vector<4x288xbf16>
    %30 = vector.extract_strided_slice %23 {offsets = [0, 36], sizes = [4, 288], strides = [1, 1]} : vector<4x326xbf16> to vector<4x288xbf16>
    %31 = vector.extract_strided_slice %23 {offsets = [0, 37], sizes = [4, 288], strides = [1, 1]} : vector<4x326xbf16> to vector<4x288xbf16>
    %32 = vector.extract_strided_slice %23 {offsets = [0, 38], sizes = [4, 288], strides = [1, 1]} : vector<4x326xbf16> to vector<4x288xbf16>
    %33 = tpu.concatenate %24, %25, %26, %27, %28, %29, %30, %31, %32 in 0 : vector<4x288xbf16>, vector<4x288xbf16>, vector<4x288xbf16>, vector<4x288xbf16>, vector<4x288xbf16>, vector<4x288xbf16>, vector<4x288xbf16>, vector<4x288xbf16>, vector<4x288xbf16> -> vector<36x288xbf16>
    %cst_10 = arith.constant dense<0.000000e+00> : vector<8x288xf32>
    %34 = tpu.matmul %0, %33, %cst_10 {dimension_numbers = #tpu.dot_dimension_numbers<[1], [0], [0], [1], [0, 0, 1, 1], [], []>} : vector<8x36xbf16>, vector<36x288xbf16>, vector<8x288xf32> -> vector<8x288xf32>
    %35 = vector.broadcast %1 : vector<1x288xf32> to vector<8x288xf32>
    %36 = arith.mulf %34, %35 : vector<8x288xf32>
    %cst_11 = arith.constant dense<0.000000e+00> : vector<8xf32>
    %37 = vector.multi_reduction <add>, %36, %cst_11 [1] : vector<8x288xf32> to vector<8xf32>
    %38 = vector.shape_cast %37 : vector<8xf32> to vector<8x1xf32>
    %39 = arith.mulf %36, %36 : vector<8x288xf32>
    %cst_12 = arith.constant dense<0.000000e+00> : vector<8xf32>
    %40 = vector.multi_reduction <add>, %39, %cst_12 [1] : vector<8x288xf32> to vector<8xf32>
    %41 = vector.shape_cast %40 : vector<8xf32> to vector<8x1xf32>
    %42 = arith.addf %18, %38 : vector<8x1xf32>
    %43 = arith.addf %21, %41 : vector<8x1xf32>
    %44 = tpu.concatenate %42, %43 in 1 : vector<8x1xf32>, vector<8x1xf32> -> vector<8x2xf32>
    %c0_13 = arith.constant 0 : index
    %c0_14 = arith.constant 0 : index
    %c0_15 = arith.constant 0 : index
    %45 = vector.load %arg4[%c0_13, %c0_14, %c0_15] : memref<1x8x2xf32, #tpu.memory_space<vmem>>, vector<1x8x2xf32>
    %46 = vector.shape_cast %45 : vector<1x8x2xf32> to vector<8x2xf32>
    %47 = vector.shape_cast %44 : vector<8x2xf32> to vector<1x8x2xf32>
    tpu.vector_store %arg4[%c0_13, %c0_14, %c0_15], %47 {strides = array<i32>} : memref<1x8x2xf32, #tpu.memory_space<vmem>>, vector<1x8x2xf32>,
    return
  }
  func.func @transform_0(%arg0: i32) -> (i32, i32, i32) {
    %c0_i32 = arith.constant 0 : i32
    %c0_i32_0 = arith.constant 0 : i32
    %c0_i32_1 = arith.constant 0 : i32
    return %arg0, %c0_i32, %c0_i32_0 : i32, i32, i32
  }
  func.func @transform_1(%arg0: i32) -> (i32, i32) {
    %c0_i32 = arith.constant 0 : i32
    %c0_i32_0 = arith.constant 0 : i32
    %c0_i32_1 = arith.constant 0 : i32
    return %c0_i32, %c0_i32_0 : i32, i32
  }
  func.func @transform_2(%arg0: i32) -> (i32, i32) {
    %c0_i32 = arith.constant 0 : i32
    %c0_i32_0 = arith.constant 0 : i32
    %c0_i32_1 = arith.constant 0 : i32
    return %c0_i32, %c0_i32_0 : i32, i32
  }
  func.func @transform_3(%arg0: i32) -> (i32, i32, i32) {
    %c0_i32 = arith.constant 0 : i32
    %c0_i32_0 = arith.constant 0 : i32
    %c0_i32_1 = arith.constant 0 : i32
    return %arg0, %c0_i32, %c0_i32_0 : i32, i32, i32
  }
}

module attributes {stable_mosaic.version = 11 : i64} {
  func.func @_conv_bn_pool_kernel(%arg0: i32, %arg1: memref<2x4x326xbf16, #tpu.memory_space<vmem>>, %arg2: memref<8x36xbf16, #tpu.memory_space<vmem>>, %arg3: memref<1x288xf32, #tpu.memory_space<vmem>>, %arg4: memref<8x1xf32, #tpu.memory_space<vmem>>, %arg5: memref<8x1xf32, #tpu.memory_space<vmem>>, %arg6: memref<2x8x288xf32, #tpu.memory_space<vmem>>) attributes {dimension_semantics = [#tpu.dimension_semantics<parallel>], iteration_bounds = array<i64: 1>, scalar_prefetch = 0 : i64, scratch_operands = 0 : i64, tpu.core_type = #tpu.core_type<tc>, window_params = [{transform_indices = @transform_0, window_bounds = array<i64: 2, 4, 326>}, {pipeline_mode = #tpu.pipeline_mode<synchronous>, transform_indices = @transform_1, window_bounds = array<i64: 8, 36>}, {pipeline_mode = #tpu.pipeline_mode<synchronous>, transform_indices = @transform_2, window_bounds = array<i64: 1, 288>}, {pipeline_mode = #tpu.pipeline_mode<synchronous>, transform_indices = @transform_3, window_bounds = array<i64: 8, 1>}, {pipeline_mode = #tpu.pipeline_mode<synchronous>, transform_indices = @transform_4, window_bounds = array<i64: 8, 1>}, {transform_indices = @transform_5, window_bounds = array<i64: 2, 8, 288>}]} {
    %c0 = arith.constant 0 : index
    %c0_0 = arith.constant 0 : index
    %0 = vector.load %arg2[%c0, %c0_0] : memref<8x36xbf16, #tpu.memory_space<vmem>>, vector<8x36xbf16>
    %c0_1 = arith.constant 0 : index
    %c0_2 = arith.constant 0 : index
    %1 = vector.load %arg3[%c0_1, %c0_2] : memref<1x288xf32, #tpu.memory_space<vmem>>, vector<1x288xf32>
    %cst = arith.constant 5.000000e-01 : f32
    %2 = vector.broadcast %cst : f32 to vector<1x288xf32>
    %3 = arith.cmpf ogt, %1, %2 : vector<1x288xf32>
    %c0_3 = arith.constant 0 : index
    %c0_4 = arith.constant 0 : index
    %4 = vector.load %arg4[%c0_3, %c0_4] : memref<8x1xf32, #tpu.memory_space<vmem>>, vector<8x1xf32>
    %c0_5 = arith.constant 0 : index
    %c0_6 = arith.constant 0 : index
    %5 = vector.load %arg5[%c0_5, %c0_6] : memref<8x1xf32, #tpu.memory_space<vmem>>, vector<8x1xf32>
    %cst_7 = arith.constant 0xFF800000 : f32
    %6 = vector.broadcast %cst_7 : f32 to vector<8x1xf32>
    %cst_8 = arith.constant 0xFF800000 : f32
    %7 = vector.broadcast %cst_8 : f32 to vector<8x18xf32>
    %c0_9 = arith.constant 0 : index
    %c0_10 = arith.constant 0 : index
    %c0_11 = arith.constant 0 : index
    %8 = vector.load %arg1[%c0_9, %c0_10, %c0_11] : memref<2x4x326xbf16, #tpu.memory_space<vmem>>, vector<1x4x326xbf16>
    %9 = vector.shape_cast %8 : vector<1x4x326xbf16> to vector<4x326xbf16>
    %10 = vector.extract_strided_slice %9 {offsets = [0, 0], sizes = [4, 288], strides = [1, 1]} : vector<4x326xbf16> to vector<4x288xbf16>
    %11 = vector.extract_strided_slice %9 {offsets = [0, 1], sizes = [4, 288], strides = [1, 1]} : vector<4x326xbf16> to vector<4x288xbf16>
    %12 = vector.extract_strided_slice %9 {offsets = [0, 2], sizes = [4, 288], strides = [1, 1]} : vector<4x326xbf16> to vector<4x288xbf16>
    %13 = vector.extract_strided_slice %9 {offsets = [0, 18], sizes = [4, 288], strides = [1, 1]} : vector<4x326xbf16> to vector<4x288xbf16>
    %14 = vector.extract_strided_slice %9 {offsets = [0, 19], sizes = [4, 288], strides = [1, 1]} : vector<4x326xbf16> to vector<4x288xbf16>
    %15 = vector.extract_strided_slice %9 {offsets = [0, 20], sizes = [4, 288], strides = [1, 1]} : vector<4x326xbf16> to vector<4x288xbf16>
    %16 = vector.extract_strided_slice %9 {offsets = [0, 36], sizes = [4, 288], strides = [1, 1]} : vector<4x326xbf16> to vector<4x288xbf16>
    %17 = vector.extract_strided_slice %9 {offsets = [0, 37], sizes = [4, 288], strides = [1, 1]} : vector<4x326xbf16> to vector<4x288xbf16>
    %18 = vector.extract_strided_slice %9 {offsets = [0, 38], sizes = [4, 288], strides = [1, 1]} : vector<4x326xbf16> to vector<4x288xbf16>
    %19 = tpu.concatenate %10, %11, %12, %13, %14, %15, %16, %17, %18 in 0 : vector<4x288xbf16>, vector<4x288xbf16>, vector<4x288xbf16>, vector<4x288xbf16>, vector<4x288xbf16>, vector<4x288xbf16>, vector<4x288xbf16>, vector<4x288xbf16>, vector<4x288xbf16> -> vector<36x288xbf16>
    %cst_12 = arith.constant dense<0.000000e+00> : vector<8x288xf32>
    %20 = tpu.matmul %0, %19, %cst_12 {dimension_numbers = #tpu.dot_dimension_numbers<[1], [0], [0], [1], [0, 0, 1, 1], [], []>} : vector<8x36xbf16>, vector<36x288xbf16>, vector<8x288xf32> -> vector<8x288xf32>
    %21 = vector.broadcast %4 : vector<8x1xf32> to vector<8x288xf32>
    %22 = arith.mulf %20, %21 : vector<8x288xf32>
    %23 = vector.broadcast %5 : vector<8x1xf32> to vector<8x288xf32>
    %24 = arith.addf %22, %23 : vector<8x288xf32>
    %cst_13 = arith.constant 0xFF800000 : f32
    %25 = vector.shape_cast %3 : vector<1x288xi1> to vector<1x288xi1>
    %26 = vector.broadcast %25 : vector<1x288xi1> to vector<8x288xi1>
    %27 = vector.broadcast %cst_13 : f32 to vector<8x288xf32>
    %28 = arith.select %26, %24, %27 : vector<8x288xi1>, vector<8x288xf32>
    %29 = tpu.concatenate %6, %28, %6 in 1 : vector<8x1xf32>, vector<8x288xf32>, vector<8x1xf32> -> vector<8x290xf32>
    %30 = vector.extract_strided_slice %29 {offsets = [0, 0], sizes = [8, 288], strides = [1, 1]} : vector<8x290xf32> to vector<8x288xf32>
    %31 = vector.extract_strided_slice %29 {offsets = [0, 1], sizes = [8, 288], strides = [1, 1]} : vector<8x290xf32> to vector<8x288xf32>
    %32 = arith.maximumf %30, %31 : vector<8x288xf32>
    %33 = vector.extract_strided_slice %29 {offsets = [0, 2], sizes = [8, 288], strides = [1, 1]} : vector<8x290xf32> to vector<8x288xf32>
    %34 = arith.maximumf %32, %33 : vector<8x288xf32>
    %35 = tpu.concatenate %7, %34, %7 in 1 : vector<8x18xf32>, vector<8x288xf32>, vector<8x18xf32> -> vector<8x324xf32>
    %36 = vector.extract_strided_slice %35 {offsets = [0, 0], sizes = [8, 288], strides = [1, 1]} : vector<8x324xf32> to vector<8x288xf32>
    %37 = vector.extract_strided_slice %35 {offsets = [0, 18], sizes = [8, 288], strides = [1, 1]} : vector<8x324xf32> to vector<8x288xf32>
    %38 = arith.maximumf %36, %37 : vector<8x288xf32>
    %39 = vector.extract_strided_slice %35 {offsets = [0, 36], sizes = [8, 288], strides = [1, 1]} : vector<8x324xf32> to vector<8x288xf32>
    %40 = arith.maximumf %38, %39 : vector<8x288xf32>
    %c0_14 = arith.constant 0 : index
    %c0_15 = arith.constant 0 : index
    %c0_16 = arith.constant 0 : index
    %41 = vector.load %arg6[%c0_14, %c0_15, %c0_16] : memref<2x8x288xf32, #tpu.memory_space<vmem>>, vector<1x8x288xf32>
    %42 = vector.shape_cast %41 : vector<1x8x288xf32> to vector<8x288xf32>
    %43 = vector.shape_cast %40 : vector<8x288xf32> to vector<1x8x288xf32>
    tpu.vector_store %arg6[%c0_14, %c0_15, %c0_16], %43 {strides = array<i32>} : memref<2x8x288xf32, #tpu.memory_space<vmem>>, vector<1x8x288xf32>,
    %c1 = arith.constant 1 : index
    %c0_17 = arith.constant 0 : index
    %c0_18 = arith.constant 0 : index
    %44 = vector.load %arg1[%c1, %c0_17, %c0_18] : memref<2x4x326xbf16, #tpu.memory_space<vmem>>, vector<1x4x326xbf16>
    %45 = vector.shape_cast %44 : vector<1x4x326xbf16> to vector<4x326xbf16>
    %46 = vector.extract_strided_slice %45 {offsets = [0, 0], sizes = [4, 288], strides = [1, 1]} : vector<4x326xbf16> to vector<4x288xbf16>
    %47 = vector.extract_strided_slice %45 {offsets = [0, 1], sizes = [4, 288], strides = [1, 1]} : vector<4x326xbf16> to vector<4x288xbf16>
    %48 = vector.extract_strided_slice %45 {offsets = [0, 2], sizes = [4, 288], strides = [1, 1]} : vector<4x326xbf16> to vector<4x288xbf16>
    %49 = vector.extract_strided_slice %45 {offsets = [0, 18], sizes = [4, 288], strides = [1, 1]} : vector<4x326xbf16> to vector<4x288xbf16>
    %50 = vector.extract_strided_slice %45 {offsets = [0, 19], sizes = [4, 288], strides = [1, 1]} : vector<4x326xbf16> to vector<4x288xbf16>
    %51 = vector.extract_strided_slice %45 {offsets = [0, 20], sizes = [4, 288], strides = [1, 1]} : vector<4x326xbf16> to vector<4x288xbf16>
    %52 = vector.extract_strided_slice %45 {offsets = [0, 36], sizes = [4, 288], strides = [1, 1]} : vector<4x326xbf16> to vector<4x288xbf16>
    %53 = vector.extract_strided_slice %45 {offsets = [0, 37], sizes = [4, 288], strides = [1, 1]} : vector<4x326xbf16> to vector<4x288xbf16>
    %54 = vector.extract_strided_slice %45 {offsets = [0, 38], sizes = [4, 288], strides = [1, 1]} : vector<4x326xbf16> to vector<4x288xbf16>
    %55 = tpu.concatenate %46, %47, %48, %49, %50, %51, %52, %53, %54 in 0 : vector<4x288xbf16>, vector<4x288xbf16>, vector<4x288xbf16>, vector<4x288xbf16>, vector<4x288xbf16>, vector<4x288xbf16>, vector<4x288xbf16>, vector<4x288xbf16>, vector<4x288xbf16> -> vector<36x288xbf16>
    %cst_19 = arith.constant dense<0.000000e+00> : vector<8x288xf32>
    %56 = tpu.matmul %0, %55, %cst_19 {dimension_numbers = #tpu.dot_dimension_numbers<[1], [0], [0], [1], [0, 0, 1, 1], [], []>} : vector<8x36xbf16>, vector<36x288xbf16>, vector<8x288xf32> -> vector<8x288xf32>
    %57 = vector.broadcast %4 : vector<8x1xf32> to vector<8x288xf32>
    %58 = arith.mulf %56, %57 : vector<8x288xf32>
    %59 = vector.broadcast %5 : vector<8x1xf32> to vector<8x288xf32>
    %60 = arith.addf %58, %59 : vector<8x288xf32>
    %cst_20 = arith.constant 0xFF800000 : f32
    %61 = vector.shape_cast %3 : vector<1x288xi1> to vector<1x288xi1>
    %62 = vector.broadcast %61 : vector<1x288xi1> to vector<8x288xi1>
    %63 = vector.broadcast %cst_20 : f32 to vector<8x288xf32>
    %64 = arith.select %62, %60, %63 : vector<8x288xi1>, vector<8x288xf32>
    %65 = tpu.concatenate %6, %64, %6 in 1 : vector<8x1xf32>, vector<8x288xf32>, vector<8x1xf32> -> vector<8x290xf32>
    %66 = vector.extract_strided_slice %65 {offsets = [0, 0], sizes = [8, 288], strides = [1, 1]} : vector<8x290xf32> to vector<8x288xf32>
    %67 = vector.extract_strided_slice %65 {offsets = [0, 1], sizes = [8, 288], strides = [1, 1]} : vector<8x290xf32> to vector<8x288xf32>
    %68 = arith.maximumf %66, %67 : vector<8x288xf32>
    %69 = vector.extract_strided_slice %65 {offsets = [0, 2], sizes = [8, 288], strides = [1, 1]} : vector<8x290xf32> to vector<8x288xf32>
    %70 = arith.maximumf %68, %69 : vector<8x288xf32>
    %71 = tpu.concatenate %7, %70, %7 in 1 : vector<8x18xf32>, vector<8x288xf32>, vector<8x18xf32> -> vector<8x324xf32>
    %72 = vector.extract_strided_slice %71 {offsets = [0, 0], sizes = [8, 288], strides = [1, 1]} : vector<8x324xf32> to vector<8x288xf32>
    %73 = vector.extract_strided_slice %71 {offsets = [0, 18], sizes = [8, 288], strides = [1, 1]} : vector<8x324xf32> to vector<8x288xf32>
    %74 = arith.maximumf %72, %73 : vector<8x288xf32>
    %75 = vector.extract_strided_slice %71 {offsets = [0, 36], sizes = [8, 288], strides = [1, 1]} : vector<8x324xf32> to vector<8x288xf32>
    %76 = arith.maximumf %74, %75 : vector<8x288xf32>
    %c1_21 = arith.constant 1 : index
    %c0_22 = arith.constant 0 : index
    %c0_23 = arith.constant 0 : index
    %77 = vector.load %arg6[%c1_21, %c0_22, %c0_23] : memref<2x8x288xf32, #tpu.memory_space<vmem>>, vector<1x8x288xf32>
    %78 = vector.shape_cast %77 : vector<1x8x288xf32> to vector<8x288xf32>
    %79 = vector.shape_cast %76 : vector<8x288xf32> to vector<1x8x288xf32>
    tpu.vector_store %arg6[%c1_21, %c0_22, %c0_23], %79 {strides = array<i32>} : memref<2x8x288xf32, #tpu.memory_space<vmem>>, vector<1x8x288xf32>,
    return
  }
  func.func @transform_0(%arg0: i32) -> (i32, i32, i32) {
    %c0_i32 = arith.constant 0 : i32
    %c0_i32_0 = arith.constant 0 : i32
    %c0_i32_1 = arith.constant 0 : i32
    return %arg0, %c0_i32, %c0_i32_0 : i32, i32, i32
  }
  func.func @transform_1(%arg0: i32) -> (i32, i32) {
    %c0_i32 = arith.constant 0 : i32
    %c0_i32_0 = arith.constant 0 : i32
    %c0_i32_1 = arith.constant 0 : i32
    return %c0_i32, %c0_i32_0 : i32, i32
  }
  func.func @transform_2(%arg0: i32) -> (i32, i32) {
    %c0_i32 = arith.constant 0 : i32
    %c0_i32_0 = arith.constant 0 : i32
    %c0_i32_1 = arith.constant 0 : i32
    return %c0_i32, %c0_i32_0 : i32, i32
  }
  func.func @transform_3(%arg0: i32) -> (i32, i32) {
    %c0_i32 = arith.constant 0 : i32
    %c0_i32_0 = arith.constant 0 : i32
    %c0_i32_1 = arith.constant 0 : i32
    return %c0_i32, %c0_i32_0 : i32, i32
  }
  func.func @transform_4(%arg0: i32) -> (i32, i32) {
    %c0_i32 = arith.constant 0 : i32
    %c0_i32_0 = arith.constant 0 : i32
    %c0_i32_1 = arith.constant 0 : i32
    return %c0_i32, %c0_i32_0 : i32, i32
  }
  func.func @transform_5(%arg0: i32) -> (i32, i32, i32) {
    %c0_i32 = arith.constant 0 : i32
    %c0_i32_0 = arith.constant 0 : i32
    %c0_i32_1 = arith.constant 0 : i32
    return %arg0, %c0_i32, %c0_i32_0 : i32, i32, i32
  }
}

</mosaic_0001>

<llo_original>
// kernel: conv_block.2
$region0: #{conv_block.2}
  #allocation0 [shape = 'u32[]', space=smem, size = 0x4, offset = 0x4, fixed_abs, tag = 'smem constant byte address 0x4 - core index']
  #allocation1 [shape = 'u32[144,128]{1,0:T(1,128)}', space=vmem, size = 0x12000, scoped, tag = 'internal scratch']
  %s0 = inlined_call_operand.vmem [shape: bf16[2,4,326], index: 0, kind: input, shape index: {}]
  %s1 = inlined_call_operand.vmem [shape: bf16[8,36], index: 1, kind: input, shape index: {}]
  %s2 = inlined_call_operand.vmem [shape: f32[1,288], index: 2, kind: input, shape index: {}]
  %s3 = inlined_call_operand.vmem [shape: f32[1,8,2], index: 3, kind: output, shape index: {}]
  %s4 = sld [smem:[#allocation0]]
  $region22: #{conv_block.2} parent=0
    _
  %s6 = ssub.s32 1, %s4
  %s7 = scalar_select 0, %s6, %s4
  // Predicated region
  $region2: #{conv_block.2} parent=0 // pred_check
    _
  $region3: #{conv_block.2} parent=0 // pred_check_branch
    %9 = sbr.rel (0) target = $region5
  $region4: #{conv_block.2} parent=0 // pred_region
    _
  $region5: #{conv_block.2} parent=0 // pred_fallthru
    _
  // Predicated region
  $region6: #{conv_block.2} parent=0 // pred_check
    _
  $region7: #{conv_block.2} parent=0 // pred_check_branch
    %11 = sbr.rel (0) target = $region9
  $region8: #{conv_block.2} parent=0 // pred_region
    _
  $region9: #{conv_block.2} parent=0 // pred_fallthru
    _
  // Predicated region
  $region10: #{conv_block.2} parent=0 // pred_check
    _
  $region11: #{conv_block.2} parent=0 // pred_check_branch
    %13 = sbr.rel (0) target = $region13
  $region12: #{conv_block.2} parent=0 // pred_region
    _
  $region13: #{conv_block.2} parent=0 // pred_fallthru
    _
  %v15 = vld [vmem:[%s1] sm:$0xf]
  %v16 = vld [vmem:[%s2] sm:$0x7]
  %v17 = vld [vmem:[%s0] sm:$0x3f]
  %v19 = vcombine.high %v17, %v17
  %v21 = vunpack.c.l.s4 1983009808
  %v22 = vunpack.c.0.s8 %v21
  %v23 = vlaneseq
  %v24 = vshrl.u32 %v23, 7
  %v25 = vsub.s32 %v22, %v24
  %v26 = vrot.slane %v17, %v25
  %v28 = vunpack.c.l.s4 1983009808
  %v29 = vunpack.c.0.s8 %v28
  %v30 = vlaneseq
  %v31 = vshrl.u32 %v30, 7
  %v32 = vsub.s32 %v29, %v31
  %v33 = vrot.slane %v19, %v32
  %v34 = vcombine.high %v26, %v26
  %v35 = vcombine.low %v17, %v17
  %v37 = vunpack.c.l.s4 1983009808
  %v38 = vunpack.c.0.s8 %v37
  %v39 = vlaneseq
  %v40 = vshrl.u32 %v39, 7
  %v41 = vsub.s32 %v38, %v40
  %v42 = vrot.slane %v35, %v41
  %v43 = vcombine.high %v42, %v42
  %44 = vrot.lane.b32.xlu0 %v42, 127
  %v45 = vpop.permute.xlu0 %44
  %46 = vrot.lane.b32.xlu0 %v43, 127
  %v47 = vpop.permute.xlu0 %46
  %48 = vrot.lane.b32.xlu0 %v26, 127
  %v49 = vpop.permute.xlu0 %48
  %vm50 = vcmask 1039360
  %v51 = vsel %vm50, %v45, %v47
  %v52 = vsel %vm50, %v47, %v49
  %v53 = vcombine.low %v26, %v26
  %v54 = vcombine.low %v33, %v33
  %55 = vrot.lane.b32.xlu0 %v53, 126
  %v56 = vpop.permute.xlu0 %55
  %57 = vrot.lane.b32.xlu0 %v26, 126
  %v58 = vpop.permute.xlu0 %57
  %59 = vrot.lane.b32.xlu0 %v54, 126
  %v60 = vpop.permute.xlu0 %59
  %vm61 = vcmask 1031168
  %v62 = vsel %vm61, %v56, %v58
  %v63 = vsel %vm61, %v58, %v60
  %v64 = vcombine.low %v42, %v42
  %65 = vrot.lane.b32.xlu0 %v64, 110
  %v66 = vpop.permute.xlu0 %65
  %67 = vrot.lane.b32.xlu0 %v42, 110
  %v68 = vpop.permute.xlu0 %67
  %69 = vrot.lane.b32.xlu0 %v53, 110
  %v70 = vpop.permute.xlu0 %69
  %vm71 = vcmask 900096
  %v72 = vsel %vm71, %v66, %v68
  %v73 = vsel %vm71, %v68, %v70
  %74 = vrot.lane.b32.xlu0 %v26, 109
  %v75 = vpop.permute.xlu0 %74
  %76 = vrot.lane.b32.xlu0 %v34, 109
  %v77 = vpop.permute.xlu0 %76
  %78 = vrot.lane.b32.xlu0 %v33, 109
  %v79 = vpop.permute.xlu0 %78
  %vm80 = vcmask 891904
  %v81 = vsel %vm80, %v75, %v77
  %v82 = vsel %vm80, %v77, %v79
  %83 = vrot.lane.b32.xlu0 %v42, 108
  %v84 = vpop.permute.xlu0 %83
  %85 = vrot.lane.b32.xlu0 %v43, 108
  %v86 = vpop.permute.xlu0 %85
  %87 = vrot.lane.b32.xlu0 %v26, 108
  %v88 = vpop.permute.xlu0 %87
  %vm89 = vcmask 883712
  %v90 = vsel %vm89, %v84, %v86
  %v91 = vsel %vm89, %v86, %v88
  %92 = vrot.lane.b32.xlu0 %v53, 92
  %v93 = vpop.permute.xlu0 %92
  %94 = vrot.lane.b32.xlu0 %v26, 92
  %v95 = vpop.permute.xlu0 %94
  %96 = vrot.lane.b32.xlu0 %v54, 92
  %v97 = vpop.permute.xlu0 %96
  %vm98 = vcmask 752640
  %v99 = vsel %vm98, %v93, %v95
  %v100 = vsel %vm98, %v95, %v97
  %101 = vrot.lane.b32.xlu0 %v64, 91
  %v102 = vpop.permute.xlu0 %101
  %103 = vrot.lane.b32.xlu0 %v42, 91
  %v104 = vpop.permute.xlu0 %103
  %105 = vrot.lane.b32.xlu0 %v53, 91
  %v106 = vpop.permute.xlu0 %105
  %vm107 = vcmask 744448
  %v108 = vsel %vm107, %v102, %v104
  %v109 = vsel %vm107, %v104, %v106
  %110 = vrot.lane.b32.xlu0 %v26, 90
  %v111 = vpop.permute.xlu0 %110
  %112 = vrot.lane.b32.xlu0 %v34, 90
  %v113 = vpop.permute.xlu0 %112
  %114 = vrot.lane.b32.xlu0 %v33, 90
  %v115 = vpop.permute.xlu0 %114
  %vm116 = vcmask 736256
  %v117 = vsel %vm116, %v111, %v113
  %v118 = vsel %vm116, %v113, %v115
  %vm119 = vcmask 1041408
  %v122 = vsel %vm119, %v26, %v51
  %v125 = vsel %vm119, %v34, %v52
  %v128 = vsel %vm119, %v33, %v49
  %vm129 = vcmask 1043456
  %v131 = vsel %vm129, %v122, %v62
  %v133 = vsel %vm129, %v125, %v63
  %v135 = vsel %vm129, %v128, %v60
  %vm136 = vcmask 1045504
  %v138 = vsel %vm136, %v131, %v72
  %v141 = vsel %vm136, %v133, %v73
  %v144 = vsel %vm136, %v135, %v70
  %v148 = vsel %vm119, %v81, %v90
  %v151 = vsel %vm119, %v82, %v91
  %v154 = vsel %vm119, %v79, %v88
  %v156 = vsel %vm129, %v148, %v99
  %v158 = vsel %vm129, %v151, %v100
  %v160 = vsel %vm129, %v154, %v97
  %v162 = vsel %vm136, %v156, %v108
  %v165 = vsel %vm136, %v158, %v109
  %v168 = vsel %vm136, %v160, %v106
  %vm170 = vcmask 293888
  %v172 = vsel %vm170, %v15, 0
  %v175 = vsel %vm119, %v117, 0
  %v178 = vsel %vm119, %v118, 0
  %v181 = vsel %vm119, %v115, 0
  %183 = vmatprep.subr.bf16.mxu0 0
  %184 = vmatpush1.bf16.msra.mxu0 0
  %185 = vmatprep.subr.bf16.mxu0 0
  %186 = vmatpush1.bf16.msra.mxu0 0
  %187 = vmatprep.subr.bf16.mxu0 0
  %188 = vmatpush1.bf16.msra.mxu0 0
  %189 = vmatprep.subr.bf16.mxu0 0
  %190 = vmatpush1.bf16.msra.mxu0 0
  %191 = vmatprep.subr.bf16.mxu0 0
  %192 = vmatpush1.bf16.msra.mxu0 0
  %193 = vmatprep.subr.bf16.mxu0 %v178
  %194 = vmatpush1.bf16.msra.mxu0 %v175
  %195 = vmatprep.subr.bf16.mxu0 %v165
  %196 = vmatpush1.bf16.msra.mxu0 %v162
  %197 = vmatprep.subr.bf16.mxu0 %v141
  %198 = vmatpush1.bf16.msra.mxu0 %v138
  %199 = vmatprep.subr.bf16.mxu0 0
  %200 = vmatpush2.bf16.msra.mxu0 0
  %201 = vmatprep.subr.bf16.mxu0 0
  %202 = vmatpush2.bf16.msra.mxu0 0
  %203 = vmatprep.subr.bf16.mxu0 0
  %204 = vmatpush2.bf16.msra.mxu0 0
  %205 = vmatprep.subr.bf16.mxu0 0
  %206 = vmatpush2.bf16.msra.mxu0 0
  %207 = vmatprep.subr.bf16.mxu0 0
  %208 = vmatpush2.bf16.msra.mxu0 0
  %209 = vmatprep.subr.bf16.mxu0 0
  %210 = vmatpush2.bf16.msra.mxu0 0
  %211 = vmatprep.subr.bf16.mxu0 0
  %212 = vmatpush2.bf16.msra.mxu0 0
  %213 = vmatprep.subr.bf16.mxu0 0
  %214 = vmatpush2.bf16.msra.mxu0 0
  %215 = vmatprep.mubr.bf16.mxu0 0
  %216 = vmatmul.mubr.bf16.gmra.mxu0 %v172
  %v217 = vpop.f32.mrf.mxu0
  %v218 = vadd.f32 0.0, %v217
  %v219 = vpop.f32.mrf.mxu0
  %v220 = vadd.f32 0.0, %v219
  %v221 = vpop.f32.mrf.mxu0
  %v222 = vpop.f32.mrf.mxu0
  %223 = vdwg.mxu0
  %224 = vmatprep.subr.bf16.mxu0 0
  %225 = vmatpush1.bf16.msra.mxu0 0
  %226 = vmatprep.subr.bf16.mxu0 0
  %227 = vmatpush1.bf16.msra.mxu0 0
  %228 = vmatprep.subr.bf16.mxu0 0
  %229 = vmatpush1.bf16.msra.mxu0 0
  %230 = vmatprep.subr.bf16.mxu0 0
  %231 = vmatpush1.bf16.msra.mxu0 0
  %232 = vmatprep.subr.bf16.mxu0 0
  %233 = vmatpush1.bf16.msra.mxu0 0
  %234 = vmatprep.subr.bf16.mxu0 0
  %235 = vmatpush1.bf16.msra.mxu0 %v181
  %236 = vmatprep.subr.bf16.mxu0 0
  %237 = vmatpush1.bf16.msra.mxu0 %v168
  %238 = vmatprep.subr.bf16.mxu0 0
  %239 = vmatpush1.bf16.msra.mxu0 %v144
  %240 = vmatprep.subr.bf16.mxu0 0
  %241 = vmatpush2.bf16.msra.mxu0 0
  %242 = vmatprep.subr.bf16.mxu0 0
  %243 = vmatpush2.bf16.msra.mxu0 0
  %244 = vmatprep.subr.bf16.mxu0 0
  %245 = vmatpush2.bf16.msra.mxu0 0
  %246 = vmatprep.subr.bf16.mxu0 0
  %247 = vmatpush2.bf16.msra.mxu0 0
  %248 = vmatprep.subr.bf16.mxu0 0
  %249 = vmatpush2.bf16.msra.mxu0 0
  %250 = vmatprep.subr.bf16.mxu0 0
  %251 = vmatpush2.bf16.msra.mxu0 0
  %252 = vmatprep.subr.bf16.mxu0 0
  %253 = vmatpush2.bf16.msra.mxu0 0
  %254 = vmatprep.subr.bf16.mxu0 0
  %255 = vmatpush2.bf16.msra.mxu0 0
  %256 = vmatprep.mubr.bf16.mxu0 0
  %257 = vmatmul.mubr.bf16.gmra.mxu0 %v172
  %v258 = vpop.f32.mrf.mxu0
  %v259 = vadd.f32 0.0, %v258
  %v260 = vpop.f32.mrf.mxu0
  %v261 = vpop.f32.mrf.mxu0
  %v262 = vpop.f32.mrf.mxu0
  %263 = vdwg.mxu0
  %v265 = vlaneseq
  %v266 = vshrl.u32 %v265, 7
  %v267 = vsub.s32 0, %v266
  %v268 = vrot.slane %v16, %v267
  %v269 = vlaneseq
  %v270 = vshrl.u32 %v269, 7
  %v271 = vsub.s32 1, %v270
  %v272 = vrot.slane %v16, %v271
  %v273 = vlaneseq
  %v274 = vshrl.u32 %v273, 7
  %v275 = vsub.s32 2, %v274
  %v276 = vrot.slane %v16, %v275
  %v280 = vmul.f32 %v218, %v268
  %v281 = vmul.f32 %v220, %v272
  %v282 = vmul.f32 %v259, %v276
  %v283 = vadd.f32 %v280, %v281
  %vm284 = vcmask 261120
  %v285 = vsel %vm284, %v282, 0.0
  %v286 = vadd.f32 %v283, %v285
  %287 = vadd.xlane.f32.xlu0 %v286
  %v288 = vpop.xlane.xlu0 %287
  %v289 = vmul.f32 %v280, %v280
  %v290 = vmul.f32 %v281, %v281
  %v291 = vmul.f32 %v282, %v282
  %v292 = vadd.f32 %v289, %v290
  %v293 = vsel %vm284, %v291, 0.0
  %v294 = vadd.f32 %v292, %v293
  %295 = vadd.xlane.f32.xlu0 %v294
  %v296 = vpop.xlane.xlu0 %295
  %s297 = scalar_lea.vmem %s0, 6
  %v298 = vld [vmem:[%s297] sm:$0x3f]
  %v300 = vcombine.high %v298, %v298
  %v302 = vunpack.c.l.s4 1983009808
  %v303 = vunpack.c.0.s8 %v302
  %v304 = vlaneseq
  %v305 = vshrl.u32 %v304, 7
  %v306 = vsub.s32 %v303, %v305
  %v307 = vrot.slane %v298, %v306
  %v309 = vunpack.c.l.s4 1983009808
  %v310 = vunpack.c.0.s8 %v309
  %v311 = vlaneseq
  %v312 = vshrl.u32 %v311, 7
  %v313 = vsub.s32 %v310, %v312
  %v314 = vrot.slane %v300, %v313
  %v315 = vcombine.high %v307, %v307
  %v316 = vcombine.low %v298, %v298
  %v318 = vunpack.c.l.s4 1983009808
  %v319 = vunpack.c.0.s8 %v318
  %v320 = vlaneseq
  %v321 = vshrl.u32 %v320, 7
  %v322 = vsub.s32 %v319, %v321
  %v323 = vrot.slane %v316, %v322
  %v324 = vcombine.high %v323, %v323
  %325 = vrot.lane.b32.xlu0 %v323, 127
  %v326 = vpop.permute.xlu0 %325
  %327 = vrot.lane.b32.xlu0 %v324, 127
  %v328 = vpop.permute.xlu0 %327
  %329 = vrot.lane.b32.xlu0 %v307, 127
  %v330 = vpop.permute.xlu0 %329
  %v331 = vsel %vm50, %v326, %v328
  %v332 = vsel %vm50, %v328, %v330
  %v333 = vcombine.low %v307, %v307
  %v334 = vcombine.low %v314, %v314
  %335 = vrot.lane.b32.xlu0 %v333, 126
  %v336 = vpop.permute.xlu0 %335
  %337 = vrot.lane.b32.xlu0 %v307, 126
  %v338 = vpop.permute.xlu0 %337
  %339 = vrot.lane.b32.xlu0 %v334, 126
  %v340 = vpop.permute.xlu0 %339
  %v341 = vsel %vm61, %v336, %v338
  %v342 = vsel %vm61, %v338, %v340
  %v343 = vcombine.low %v323, %v323
  %344 = vrot.lane.b32.xlu0 %v343, 110
  %v345 = vpop.permute.xlu0 %344
  %346 = vrot.lane.b32.xlu0 %v323, 110
  %v347 = vpop.permute.xlu0 %346
  %348 = vrot.lane.b32.xlu0 %v333, 110
  %v349 = vpop.permute.xlu0 %348
  %v350 = vsel %vm71, %v345, %v347
  %v351 = vsel %vm71, %v347, %v349
  %352 = vrot.lane.b32.xlu0 %v307, 109
  %v353 = vpop.permute.xlu0 %352
  %354 = vrot.lane.b32.xlu0 %v315, 109
  %v355 = vpop.permute.xlu0 %354
  %356 = vrot.lane.b32.xlu0 %v314, 109
  %v357 = vpop.permute.xlu0 %356
  %v358 = vsel %vm80, %v353, %v355
  %v359 = vsel %vm80, %v355, %v357
  %360 = vrot.lane.b32.xlu0 %v323, 108
  %v361 = vpop.permute.xlu0 %360
  %362 = vrot.lane.b32.xlu0 %v324, 108
  %v363 = vpop.permute.xlu0 %362
  %364 = vrot.lane.b32.xlu0 %v307, 108
  %v365 = vpop.permute.xlu0 %364
  %v366 = vsel %vm89, %v361, %v363
  %v367 = vsel %vm89, %v363, %v365
  %368 = vrot.lane.b32.xlu0 %v333, 92
  %v369 = vpop.permute.xlu0 %368
  %370 = vrot.lane.b32.xlu0 %v307, 92
  %v371 = vpop.permute.xlu0 %370
  %372 = vrot.lane.b32.xlu0 %v334, 92
  %v373 = vpop.permute.xlu0 %372
  %v374 = vsel %vm98, %v369, %v371
  %v375 = vsel %vm98, %v371, %v373
  %376 = vrot.lane.b32.xlu0 %v343, 91
  %v377 = vpop.permute.xlu0 %376
  %378 = vrot.lane.b32.xlu0 %v323, 91
  %v379 = vpop.permute.xlu0 %378
  %380 = vrot.lane.b32.xlu0 %v333, 91
  %v381 = vpop.permute.xlu0 %380
  %v382 = vsel %vm107, %v377, %v379
  %v383 = vsel %vm107, %v379, %v381
  %384 = vrot.lane.b32.xlu0 %v307, 90
  %v385 = vpop.permute.xlu0 %384
  %386 = vrot.lane.b32.xlu0 %v315, 90
  %v387 = vpop.permute.xlu0 %386
  %388 = vrot.lane.b32.xlu0 %v314, 90
  %v389 = vpop.permute.xlu0 %388
  %v390 = vsel %vm116, %v385, %v387
  %v391 = vsel %vm116, %v387, %v389
  %v394 = vsel %vm119, %v307, %v331
  %v397 = vsel %vm119, %v315, %v332
  %v400 = vsel %vm119, %v314, %v330
  %v402 = vsel %vm129, %v394, %v341
  %v404 = vsel %vm129, %v397, %v342
  %v406 = vsel %vm129, %v400, %v340
  %v408 = vsel %vm136, %v402, %v350
  %v411 = vsel %vm136, %v404, %v351
  %v414 = vsel %vm136, %v406, %v349
  %v418 = vsel %vm119, %v358, %v366
  %v421 = vsel %vm119, %v359, %v367
  %v424 = vsel %vm119, %v357, %v365
  %v426 = vsel %vm129, %v418, %v374
  %v428 = vsel %vm129, %v421, %v375
  %v430 = vsel %vm129, %v424, %v373
  %v432 = vsel %vm136, %v426, %v382
  %v435 = vsel %vm136, %v428, %v383
  %v438 = vsel %vm136, %v430, %v381
  %v441 = vsel %vm119, %v390, 0
  %v444 = vsel %vm119, %v391, 0
  %v447 = vsel %vm119, %v389, 0
  %449 = vmatprep.subr.bf16.mxu0 0
  %450 = vmatpush1.bf16.msra.mxu0 0
  %451 = vmatprep.subr.bf16.mxu0 0
  %452 = vmatpush1.bf16.msra.mxu0 0
  %453 = vmatprep.subr.bf16.mxu0 0
  %454 = vmatpush1.bf16.msra.mxu0 0
  %455 = vmatprep.subr.bf16.mxu0 0
  %456 = vmatpush1.bf16.msra.mxu0 0
  %457 = vmatprep.subr.bf16.mxu0 0
  %458 = vmatpush1.bf16.msra.mxu0 0
  %459 = vmatprep.subr.bf16.mxu0 %v444
  %460 = vmatpush1.bf16.msra.mxu0 %v441
  %461 = vmatprep.subr.bf16.mxu0 %v435
  %462 = vmatpush1.bf16.msra.mxu0 %v432
  %463 = vmatprep.subr.bf16.mxu0 %v411
  %464 = vmatpush1.bf16.msra.mxu0 %v408
  %465 = vmatprep.subr.bf16.mxu0 0
  %466 = vmatpush2.bf16.msra.mxu0 0
  %467 = vmatprep.subr.bf16.mxu0 0
  %468 = vmatpush2.bf16.msra.mxu0 0
  %469 = vmatprep.subr.bf16.mxu0 0
  %470 = vmatpush2.bf16.msra.mxu0 0
  %471 = vmatprep.subr.bf16.mxu0 0
  %472 = vmatpush2.bf16.msra.mxu0 0
  %473 = vmatprep.subr.bf16.mxu0 0
  %474 = vmatpush2.bf16.msra.mxu0 0
  %475 = vmatprep.subr.bf16.mxu0 0
  %476 = vmatpush2.bf16.msra.mxu0 0
  %477 = vmatprep.subr.bf16.mxu0 0
  %478 = vmatpush2.bf16.msra.mxu0 0
  %479 = vmatprep.subr.bf16.mxu0 0
  %480 = vmatpush2.bf16.msra.mxu0 0
  %481 = vmatprep.mubr.bf16.mxu0 0
  %482 = vmatmul.mubr.bf16.gmra.mxu0 %v172
  %v483 = vpop.f32.mrf.mxu0
  %v484 = vadd.f32 0.0, %v483
  %v485 = vpop.f32.mrf.mxu0
  %v486 = vadd.f32 0.0, %v485
  %v487 = vpop.f32.mrf.mxu0
  %v488 = vpop.f32.mrf.mxu0
  %489 = vdwg.mxu0
  %490 = vmatprep.subr.bf16.mxu0 0
  %491 = vmatpush1.bf16.msra.mxu0 0
  %492 = vmatprep.subr.bf16.mxu0 0
  %493 = vmatpush1.bf16.msra.mxu0 0
  %494 = vmatprep.subr.bf16.mxu0 0
  %495 = vmatpush1.bf16.msra.mxu0 0
  %496 = vmatprep.subr.bf16.mxu0 0
  %497 = vmatpush1.bf16.msra.mxu0 0
  %498 = vmatprep.subr.bf16.mxu0 0
  %499 = vmatpush1.bf16.msra.mxu0 0
  %500 = vmatprep.subr.bf16.mxu0 0
  %501 = vmatpush1.bf16.msra.mxu0 %v447
  %502 = vmatprep.subr.bf16.mxu0 0
  %503 = vmatpush1.bf16.msra.mxu0 %v438
  %504 = vmatprep.subr.bf16.mxu0 0
  %505 = vmatpush1.bf16.msra.mxu0 %v414
  %506 = vmatprep.subr.bf16.mxu0 0
  %507 = vmatpush2.bf16.msra.mxu0 0
  %508 = vmatprep.subr.bf16.mxu0 0
  %509 = vmatpush2.bf16.msra.mxu0 0
  %510 = vmatprep.subr.bf16.mxu0 0
  %511 = vmatpush2.bf16.msra.mxu0 0
  %512 = vmatprep.subr.bf16.mxu0 0
  %513 = vmatpush2.bf16.msra.mxu0 0
  %514 = vmatprep.subr.bf16.mxu0 0
  %515 = vmatpush2.bf16.msra.mxu0 0
  %516 = vmatprep.subr.bf16.mxu0 0
  %517 = vmatpush2.bf16.msra.mxu0 0
  %518 = vmatprep.subr.bf16.mxu0 0
  %519 = vmatpush2.bf16.msra.mxu0 0
  %520 = vmatprep.subr.bf16.mxu0 0
  %521 = vmatpush2.bf16.msra.mxu0 0
  %522 = vmatprep.mubr.bf16.mxu0 0
  %523 = vmatmul.mubr.bf16.gmra.mxu0 %v172
  %v524 = vpop.f32.mrf.mxu0
  %v525 = vadd.f32 0.0, %v524
  %v526 = vpop.f32.mrf.mxu0
  %v527 = vpop.f32.mrf.mxu0
  %v528 = vpop.f32.mrf.mxu0
  %529 = vdwg.mxu0
  %v530 = vmul.f32 %v484, %v268
  %v531 = vmul.f32 %v486, %v272
  %v532 = vmul.f32 %v525, %v276
  %v533 = vadd.f32 %v530, %v531
  %v534 = vsel %vm284, %v532, 0.0
  %v535 = vadd.f32 %v533, %v534
  %536 = vadd.xlane.f32.xlu0 %v535
  %v537 = vpop.xlane.xlu0 %536
  %v538 = vmul.f32 %v530, %v530
  %v539 = vmul.f32 %v531, %v531
  %v540 = vmul.f32 %v532, %v532
  %v541 = vadd.f32 %v538, %v539
  %v542 = vsel %vm284, %v540, 0.0
  %v543 = vadd.f32 %v541, %v542
  %544 = vadd.xlane.f32.xlu0 %v543
  %v545 = vpop.xlane.xlu0 %544
  %v546 = vadd.f32 %v288, %v537
  %v547 = vadd.f32 %v296, %v545
  %vm548 = vcmask 7168
  %v549 = vsel %vm548, %v546, %v547
  %vm550 = vcmask 15360
  %551 = vst.msk [vmem:[%s3] sm:$0xff] %vm550, %v549
  // Predicated region
  $region14: #{conv_block.2} parent=0 // pred_check
    _
  $region15: #{conv_block.2} parent=0 // pred_check_branch
    %553 = sbr.rel (0) target = $region17
  $region16: #{conv_block.2} parent=0 // pred_region
    _
  $region17: #{conv_block.2} parent=0 // pred_fallthru
    _
  // Predicated region
  $region18: #{conv_block.2} parent=0 // pred_check
    _
  $region19: #{conv_block.2} parent=0 // pred_check_branch
    %555 = sbr.rel (0) target = $region21
  $region20: #{conv_block.2} parent=0 // pred_region
    _
  $region21: #{conv_block.2} parent=0 // pred_fallthru
    _

// kernel: conv_block.3
$region0: #{conv_block.3}
  #allocation0 [shape = 'u32[]', space=smem, size = 0x4, offset = 0x4, fixed_abs, tag = 'smem constant byte address 0x4 - core index']
  #allocation1 [shape = 'u32[144,128]{1,0:T(1,128)}', space=vmem, size = 0x12000, scoped, tag = 'internal scratch']
  %s0 = inlined_call_operand.vmem [shape: bf16[2,4,326], index: 0, kind: input, shape index: {}]
  %s1 = inlined_call_operand.vmem [shape: bf16[8,36], index: 1, kind: input, shape index: {}]
  %s2 = inlined_call_operand.vmem [shape: f32[1,288], index: 2, kind: input, shape index: {}]
  %s3 = inlined_call_operand.vmem [shape: f32[8,1], index: 3, kind: input, shape index: {}]
  %s4 = inlined_call_operand.vmem [shape: f32[8,1], index: 4, kind: input, shape index: {}]
  %s5 = inlined_call_operand.vmem [shape: f32[2,8,288], index: 5, kind: output, shape index: {}]
  %s6 = sld [smem:[#allocation0]]
  $region30: #{conv_block.3} parent=0
    _
  %s8 = ssub.s32 1, %s6
  %s9 = scalar_select 0, %s8, %s6
  // Predicated region
  $region2: #{conv_block.3} parent=0 // pred_check
    _
  $region3: #{conv_block.3} parent=0 // pred_check_branch
    %11 = sbr.rel (0) target = $region5
  $region4: #{conv_block.3} parent=0 // pred_region
    _
  $region5: #{conv_block.3} parent=0 // pred_fallthru
    _
  // Predicated region
  $region6: #{conv_block.3} parent=0 // pred_check
    _
  $region7: #{conv_block.3} parent=0 // pred_check_branch
    %13 = sbr.rel (0) target = $region9
  $region8: #{conv_block.3} parent=0 // pred_region
    _
  $region9: #{conv_block.3} parent=0 // pred_fallthru
    _
  // Predicated region
  $region10: #{conv_block.3} parent=0 // pred_check
    _
  $region11: #{conv_block.3} parent=0 // pred_check_branch
    %15 = sbr.rel (0) target = $region13
  $region12: #{conv_block.3} parent=0 // pred_region
    _
  $region13: #{conv_block.3} parent=0 // pred_fallthru
    _
  // Predicated region
  $region14: #{conv_block.3} parent=0 // pred_check
    _
  $region15: #{conv_block.3} parent=0 // pred_check_branch
    %17 = sbr.rel (0) target = $region17
  $region16: #{conv_block.3} parent=0 // pred_region
    _
  $region17: #{conv_block.3} parent=0 // pred_fallthru
    _
  // Predicated region
  $region18: #{conv_block.3} parent=0 // pred_check
    _
  $region19: #{conv_block.3} parent=0 // pred_check_branch
    %19 = sbr.rel (0) target = $region21
  $region20: #{conv_block.3} parent=0 // pred_region
    _
  $region21: #{conv_block.3} parent=0 // pred_fallthru
    _
  %v21 = vld [vmem:[%s1] sm:$0xf]
  %v22 = vld [vmem:[%s2] sm:$0x7]
  %vm23 = vcmp.gt.f32.partialorder %v22, 0.5
  %v24 = vld [vmem:[%s3] sm:$0xff]
  %v25 = vld [vmem:[%s4] sm:$0xff]
  %v26 = vld [vmem:[%s0] sm:$0x3f]
  %v28 = vcombine.high %v26, %v26
  %v30 = vunpack.c.l.s4 1983009808
  %v31 = vunpack.c.0.s8 %v30
  %v32 = vlaneseq
  %v33 = vshrl.u32 %v32, 7
  %v34 = vsub.s32 %v31, %v33
  %v35 = vrot.slane %v26, %v34
  %v37 = vunpack.c.l.s4 1983009808
  %v38 = vunpack.c.0.s8 %v37
  %v39 = vlaneseq
  %v40 = vshrl.u32 %v39, 7
  %v41 = vsub.s32 %v38, %v40
  %v42 = vrot.slane %v28, %v41
  %v43 = vcombine.high %v35, %v35
  %v44 = vcombine.low %v26, %v26
  %v46 = vunpack.c.l.s4 1983009808
  %v47 = vunpack.c.0.s8 %v46
  %v48 = vlaneseq
  %v49 = vshrl.u32 %v48, 7
  %v50 = vsub.s32 %v47, %v49
  %v51 = vrot.slane %v44, %v50
  %v52 = vcombine.high %v51, %v51
  %53 = vrot.lane.b32.xlu0 %v51, 127
  %v54 = vpop.permute.xlu0 %53
  %55 = vrot.lane.b32.xlu0 %v52, 127
  %v56 = vpop.permute.xlu0 %55
  %57 = vrot.lane.b32.xlu0 %v35, 127
  %v58 = vpop.permute.xlu0 %57
  %vm59 = vcmask 1039360
  %v60 = vsel %vm59, %v54, %v56
  %v61 = vsel %vm59, %v56, %v58
  %v62 = vcombine.low %v35, %v35
  %v63 = vcombine.low %v42, %v42
  %64 = vrot.lane.b32.xlu0 %v62, 126
  %v65 = vpop.permute.xlu0 %64
  %66 = vrot.lane.b32.xlu0 %v35, 126
  %v67 = vpop.permute.xlu0 %66
  %68 = vrot.lane.b32.xlu0 %v63, 126
  %v69 = vpop.permute.xlu0 %68
  %vm70 = vcmask 1031168
  %v71 = vsel %vm70, %v65, %v67
  %v72 = vsel %vm70, %v67, %v69
  %v73 = vcombine.low %v51, %v51
  %74 = vrot.lane.b32.xlu0 %v73, 110
  %v75 = vpop.permute.xlu0 %74
  %76 = vrot.lane.b32.xlu0 %v51, 110
  %v77 = vpop.permute.xlu0 %76
  %78 = vrot.lane.b32.xlu0 %v62, 110
  %v79 = vpop.permute.xlu0 %78
  %vm80 = vcmask 900096
  %v81 = vsel %vm80, %v75, %v77
  %v82 = vsel %vm80, %v77, %v79
  %83 = vrot.lane.b32.xlu0 %v35, 109
  %v84 = vpop.permute.xlu0 %83
  %85 = vrot.lane.b32.xlu0 %v43, 109
  %v86 = vpop.permute.xlu0 %85
  %87 = vrot.lane.b32.xlu0 %v42, 109
  %v88 = vpop.permute.xlu0 %87
  %vm89 = vcmask 891904
  %v90 = vsel %vm89, %v84, %v86
  %v91 = vsel %vm89, %v86, %v88
  %92 = vrot.lane.b32.xlu0 %v51, 108
  %v93 = vpop.permute.xlu0 %92
  %94 = vrot.lane.b32.xlu0 %v52, 108
  %v95 = vpop.permute.xlu0 %94
  %96 = vrot.lane.b32.xlu0 %v35, 108
  %v97 = vpop.permute.xlu0 %96
  %vm98 = vcmask 883712
  %v99 = vsel %vm98, %v93, %v95
  %v100 = vsel %vm98, %v95, %v97
  %101 = vrot.lane.b32.xlu0 %v62, 92
  %v102 = vpop.permute.xlu0 %101
  %103 = vrot.lane.b32.xlu0 %v35, 92
  %v104 = vpop.permute.xlu0 %103
  %105 = vrot.lane.b32.xlu0 %v63, 92
  %v106 = vpop.permute.xlu0 %105
  %vm107 = vcmask 752640
  %v108 = vsel %vm107, %v102, %v104
  %v109 = vsel %vm107, %v104, %v106
  %110 = vrot.lane.b32.xlu0 %v73, 91
  %v111 = vpop.permute.xlu0 %110
  %112 = vrot.lane.b32.xlu0 %v51, 91
  %v113 = vpop.permute.xlu0 %112
  %114 = vrot.lane.b32.xlu0 %v62, 91
  %v115 = vpop.permute.xlu0 %114
  %vm116 = vcmask 744448
  %v117 = vsel %vm116, %v111, %v113
  %v118 = vsel %vm116, %v113, %v115
  %119 = vrot.lane.b32.xlu0 %v35, 90
  %v120 = vpop.permute.xlu0 %119
  %121 = vrot.lane.b32.xlu0 %v43, 90
  %v122 = vpop.permute.xlu0 %121
  %123 = vrot.lane.b32.xlu0 %v42, 90
  %v124 = vpop.permute.xlu0 %123
  %vm125 = vcmask 736256
  %v126 = vsel %vm125, %v120, %v122
  %v127 = vsel %vm125, %v122, %v124
  %vm128 = vcmask 1041408
  %v131 = vsel %vm128, %v35, %v60
  %v134 = vsel %vm128, %v43, %v61
  %v137 = vsel %vm128, %v42, %v58
  %vm138 = vcmask 1043456
  %v140 = vsel %vm138, %v131, %v71
  %v142 = vsel %vm138, %v134, %v72
  %v144 = vsel %vm138, %v137, %v69
  %vm145 = vcmask 1045504
  %v147 = vsel %vm145, %v140, %v81
  %v150 = vsel %vm145, %v142, %v82
  %v153 = vsel %vm145, %v144, %v79
  %v157 = vsel %vm128, %v90, %v99
  %v160 = vsel %vm128, %v91, %v100
  %v163 = vsel %vm128, %v88, %v97
  %v165 = vsel %vm138, %v157, %v108
  %v167 = vsel %vm138, %v160, %v109
  %v169 = vsel %vm138, %v163, %v106
  %v171 = vsel %vm145, %v165, %v117
  %v174 = vsel %vm145, %v167, %v118
  %v177 = vsel %vm145, %v169, %v115
  %vm179 = vcmask 293888
  %v181 = vsel %vm179, %v21, 0
  %v184 = vsel %vm128, %v126, 0
  %v187 = vsel %vm128, %v127, 0
  %v190 = vsel %vm128, %v124, 0
  %192 = vmatprep.subr.bf16.mxu0 0
  %193 = vmatpush1.bf16.msra.mxu0 0
  %194 = vmatprep.subr.bf16.mxu0 0
  %195 = vmatpush1.bf16.msra.mxu0 0
  %196 = vmatprep.subr.bf16.mxu0 0
  %197 = vmatpush1.bf16.msra.mxu0 0
  %198 = vmatprep.subr.bf16.mxu0 0
  %199 = vmatpush1.bf16.msra.mxu0 0
  %200 = vmatprep.subr.bf16.mxu0 0
  %201 = vmatpush1.bf16.msra.mxu0 0
  %202 = vmatprep.subr.bf16.mxu0 %v187
  %203 = vmatpush1.bf16.msra.mxu0 %v184
  %204 = vmatprep.subr.bf16.mxu0 %v174
  %205 = vmatpush1.bf16.msra.mxu0 %v171
  %206 = vmatprep.subr.bf16.mxu0 %v150
  %207 = vmatpush1.bf16.msra.mxu0 %v147
  %208 = vmatprep.subr.bf16.mxu0 0
  %209 = vmatpush2.bf16.msra.mxu0 0
  %210 = vmatprep.subr.bf16.mxu0 0
  %211 = vmatpush2.bf16.msra.mxu0 0
  %212 = vmatprep.subr.bf16.mxu0 0
  %213 = vmatpush2.bf16.msra.mxu0 0
  %214 = vmatprep.subr.bf16.mxu0 0
  %215 = vmatpush2.bf16.msra.mxu0 0
  %216 = vmatprep.subr.bf16.mxu0 0
  %217 = vmatpush2.bf16.msra.mxu0 0
  %218 = vmatprep.subr.bf16.mxu0 0
  %219 = vmatpush2.bf16.msra.mxu0 0
  %220 = vmatprep.subr.bf16.mxu0 0
  %221 = vmatpush2.bf16.msra.mxu0 0
  %222 = vmatprep.subr.bf16.mxu0 0
  %223 = vmatpush2.bf16.msra.mxu0 0
  %224 = vmatprep.mubr.bf16.mxu0 0
  %225 = vmatmul.mubr.bf16.gmra.mxu0 %v181
  %v226 = vpop.f32.mrf.mxu0
  %v227 = vadd.f32 0.0, %v226
  %v228 = vpop.f32.mrf.mxu0
  %v229 = vadd.f32 0.0, %v228
  %v230 = vpop.f32.mrf.mxu0
  %v231 = vpop.f32.mrf.mxu0
  %232 = vdwg.mxu0
  %233 = vmatprep.subr.bf16.mxu0 0
  %234 = vmatpush1.bf16.msra.mxu0 0
  %235 = vmatprep.subr.bf16.mxu0 0
  %236 = vmatpush1.bf16.msra.mxu0 0
  %237 = vmatprep.subr.bf16.mxu0 0
  %238 = vmatpush1.bf16.msra.mxu0 0
  %239 = vmatprep.subr.bf16.mxu0 0
  %240 = vmatpush1.bf16.msra.mxu0 0
  %241 = vmatprep.subr.bf16.mxu0 0
  %242 = vmatpush1.bf16.msra.mxu0 0
  %243 = vmatprep.subr.bf16.mxu0 0
  %244 = vmatpush1.bf16.msra.mxu0 %v190
  %245 = vmatprep.subr.bf16.mxu0 0
  %246 = vmatpush1.bf16.msra.mxu0 %v177
  %247 = vmatprep.subr.bf16.mxu0 0
  %248 = vmatpush1.bf16.msra.mxu0 %v153
  %249 = vmatprep.subr.bf16.mxu0 0
  %250 = vmatpush2.bf16.msra.mxu0 0
  %251 = vmatprep.subr.bf16.mxu0 0
  %252 = vmatpush2.bf16.msra.mxu0 0
  %253 = vmatprep.subr.bf16.mxu0 0
  %254 = vmatpush2.bf16.msra.mxu0 0
  %255 = vmatprep.subr.bf16.mxu0 0
  %256 = vmatpush2.bf16.msra.mxu0 0
  %257 = vmatprep.subr.bf16.mxu0 0
  %258 = vmatpush2.bf16.msra.mxu0 0
  %259 = vmatprep.subr.bf16.mxu0 0
  %260 = vmatpush2.bf16.msra.mxu0 0
  %261 = vmatprep.subr.bf16.mxu0 0
  %262 = vmatpush2.bf16.msra.mxu0 0
  %263 = vmatprep.subr.bf16.mxu0 0
  %264 = vmatpush2.bf16.msra.mxu0 0
  %265 = vmatprep.mubr.bf16.mxu0 0
  %266 = vmatmul.mubr.bf16.gmra.mxu0 %v181
  %v267 = vpop.f32.mrf.mxu0
  %v268 = vadd.f32 0.0, %v267
  %v269 = vpop.f32.mrf.mxu0
  %v270 = vpop.f32.mrf.mxu0
  %v271 = vpop.f32.mrf.mxu0
  %272 = vdwg.mxu0
  %274 = vset.pattern.permute.xlu0 0
  %275 = vperm.xlu0 %274, %v24
  %v276 = vpop.permute.xlu0 %275
  %v278 = vmul.f32 %v227, %v276
  %v279 = vmul.f32 %v229, %v276
  %v280 = vmul.f32 %v268, %v276
  %282 = vset.pattern.permute.xlu0 0
  %283 = vperm.xlu0 %282, %v25
  %v284 = vpop.permute.xlu0 %283
  %v286 = vadd.f32 %v278, %v284
  %v287 = vadd.f32 %v279, %v284
  %v288 = vadd.f32 %v280, %v284
  %v289 = vsel %vm23, 1, 0
  %v290 = vlaneseq
  %v291 = vshrl.u32 %v290, 7
  %v292 = vsub.s32 0, %v291
  %v293 = vrot.slane %v289, %v292
  %v294 = vlaneseq
  %v295 = vshrl.u32 %v294, 7
  %v296 = vsub.s32 1, %v295
  %v297 = vrot.slane %v289, %v296
  %v298 = vlaneseq
  %v299 = vshrl.u32 %v298, 7
  %v300 = vsub.s32 2, %v299
  %v301 = vrot.slane %v289, %v300
  %vm302 = vcmp.eq.s32.totalorder %v293, 1
  %vm303 = vcmp.eq.s32.totalorder %v297, 1
  %vm304 = vcmp.eq.s32.totalorder %v301, 1
  %v305 = vsel %vm302, %v286, -inf
  %v306 = vsel %vm303, %v287, -inf
  %v307 = vsel %vm304, %v288, -inf
  %311 = vrot.lane.b32.xlu0 %v305, 1
  %v312 = vpop.permute.xlu0 %311
  %313 = vrot.lane.b32.xlu0 %v306, 1
  %v314 = vpop.permute.xlu0 %313
  %315 = vrot.lane.b32.xlu0 %v307, 1
  %v316 = vpop.permute.xlu0 %315
  %vm317 = vcmask 7168
  %v318 = vsel %vm317, %v312, %v314
  %v319 = vsel %vm317, %v314, %v316
  %v323 = vsel %vm317, -inf, %v312
  %vm324 = vcmask 269312
  %v325 = vsel %vm324, %v319, -inf
  %328 = vrot.lane.b32.xlu0 %v323, 127
  %v329 = vpop.permute.xlu0 %328
  %330 = vrot.lane.b32.xlu0 %v318, 127
  %v331 = vpop.permute.xlu0 %330
  %332 = vrot.lane.b32.xlu0 %v325, 127
  %v333 = vpop.permute.xlu0 %332
  %vm334 = vcmask 1039360
  %v335 = vsel %vm334, %v329, %v331
  %v336 = vsel %vm334, %v331, %v333
  %v340 = vmax.f32 %v323, %v335
  %v341 = vmax.f32 %v318, %v336
  %v342 = vmax.f32 %v325, %v333
  %343 = vrot.lane.b32.xlu0 %v323, 126
  %v344 = vpop.permute.xlu0 %343
  %345 = vrot.lane.b32.xlu0 %v318, 126
  %v346 = vpop.permute.xlu0 %345
  %347 = vrot.lane.b32.xlu0 %v325, 126
  %v348 = vpop.permute.xlu0 %347
  %vm349 = vcmask 1031168
  %v350 = vsel %vm349, %v344, %v346
  %v351 = vsel %vm349, %v346, %v348
  %v355 = vmax.f32 %v340, %v350
  %v356 = vmax.f32 %v341, %v351
  %v357 = vmax.f32 %v342, %v348
  %361 = vrot.lane.b32.xlu0 %v355, 18
  %v362 = vpop.permute.xlu0 %361
  %363 = vrot.lane.b32.xlu0 %v356, 18
  %v364 = vpop.permute.xlu0 %363
  %365 = vrot.lane.b32.xlu0 %v357, 18
  %v366 = vpop.permute.xlu0 %365
  %vm367 = vcmask 146432
  %v368 = vsel %vm367, %v362, %v364
  %v369 = vsel %vm367, %v364, %v366
  %v373 = vsel %vm367, -inf, %v362
  %vm374 = vcmask 408576
  %v375 = vsel %vm374, %v369, -inf
  %378 = vrot.lane.b32.xlu0 %v373, 110
  %v379 = vpop.permute.xlu0 %378
  %380 = vrot.lane.b32.xlu0 %v368, 110
  %v381 = vpop.permute.xlu0 %380
  %382 = vrot.lane.b32.xlu0 %v375, 110
  %v383 = vpop.permute.xlu0 %382
  %vm384 = vcmask 900096
  %v385 = vsel %vm384, %v379, %v381
  %v386 = vsel %vm384, %v381, %v383
  %v390 = vmax.f32 %v373, %v385
  %v391 = vmax.f32 %v368, %v386
  %v392 = vmax.f32 %v375, %v383
  %393 = vrot.lane.b32.xlu0 %v373, 92
  %v394 = vpop.permute.xlu0 %393
  %395 = vrot.lane.b32.xlu0 %v368, 92
  %v396 = vpop.permute.xlu0 %395
  %397 = vrot.lane.b32.xlu0 %v375, 92
  %v398 = vpop.permute.xlu0 %397
  %vm399 = vcmask 752640
  %v400 = vsel %vm399, %v394, %v396
  %v401 = vsel %vm399, %v396, %v398
  %v405 = vmax.f32 %v390, %v400
  %v406 = vmax.f32 %v391, %v401
  %v407 = vmax.f32 %v392, %v398
  %408 = vst [vmem:[%s5] sm:$0xff] %v405
  %409 = vst [vmem:[%s5 + $0x8] sm:$0xff] %v406
  %vm410 = vcmask 261120
  %411 = vst.msk [vmem:[%s5 + $0x10] sm:$0xff] %vm410, %v407
  %s412 = scalar_lea.vmem %s0, 6
  %v413 = vld [vmem:[%s412] sm:$0x3f]
  %v415 = vcombine.high %v413, %v413
  %v417 = vunpack.c.l.s4 1983009808
  %v418 = vunpack.c.0.s8 %v417
  %v419 = vlaneseq
  %v420 = vshrl.u32 %v419, 7
  %v421 = vsub.s32 %v418, %v420
  %v422 = vrot.slane %v413, %v421
  %v424 = vunpack.c.l.s4 1983009808
  %v425 = vunpack.c.0.s8 %v424
  %v426 = vlaneseq
  %v427 = vshrl.u32 %v426, 7
  %v428 = vsub.s32 %v425, %v427
  %v429 = vrot.slane %v415, %v428
  %v430 = vcombine.high %v422, %v422
  %v431 = vcombine.low %v413, %v413
  %v433 = vunpack.c.l.s4 1983009808
  %v434 = vunpack.c.0.s8 %v433
  %v435 = vlaneseq
  %v436 = vshrl.u32 %v435, 7
  %v437 = vsub.s32 %v434, %v436
  %v438 = vrot.slane %v431, %v437
  %v439 = vcombine.high %v438, %v438
  %440 = vrot.lane.b32.xlu0 %v438, 127
  %v441 = vpop.permute.xlu0 %440
  %442 = vrot.lane.b32.xlu0 %v439, 127
  %v443 = vpop.permute.xlu0 %442
  %444 = vrot.lane.b32.xlu0 %v422, 127
  %v445 = vpop.permute.xlu0 %444
  %v446 = vsel %vm59, %v441, %v443
  %v447 = vsel %vm59, %v443, %v445
  %v448 = vcombine.low %v422, %v422
  %v449 = vcombine.low %v429, %v429
  %450 = vrot.lane.b32.xlu0 %v448, 126
  %v451 = vpop.permute.xlu0 %450
  %452 = vrot.lane.b32.xlu0 %v422, 126
  %v453 = vpop.permute.xlu0 %452
  %454 = vrot.lane.b32.xlu0 %v449, 126
  %v455 = vpop.permute.xlu0 %454
  %v456 = vsel %vm70, %v451, %v453
  %v457 = vsel %vm70, %v453, %v455
  %v458 = vcombine.low %v438, %v438
  %459 = vrot.lane.b32.xlu0 %v458, 110
  %v460 = vpop.permute.xlu0 %459
  %461 = vrot.lane.b32.xlu0 %v438, 110
  %v462 = vpop.permute.xlu0 %461
  %463 = vrot.lane.b32.xlu0 %v448, 110
  %v464 = vpop.permute.xlu0 %463
  %v465 = vsel %vm80, %v460, %v462
  %v466 = vsel %vm80, %v462, %v464
  %467 = vrot.lane.b32.xlu0 %v422, 109
  %v468 = vpop.permute.xlu0 %467
  %469 = vrot.lane.b32.xlu0 %v430, 109
  %v470 = vpop.permute.xlu0 %469
  %471 = vrot.lane.b32.xlu0 %v429, 109
  %v472 = vpop.permute.xlu0 %471
  %v473 = vsel %vm89, %v468, %v470
  %v474 = vsel %vm89, %v470, %v472
  %475 = vrot.lane.b32.xlu0 %v438, 108
  %v476 = vpop.permute.xlu0 %475
  %477 = vrot.lane.b32.xlu0 %v439, 108
  %v478 = vpop.permute.xlu0 %477
  %479 = vrot.lane.b32.xlu0 %v422, 108
  %v480 = vpop.permute.xlu0 %479
  %v481 = vsel %vm98, %v476, %v478
  %v482 = vsel %vm98, %v478, %v480
  %483 = vrot.lane.b32.xlu0 %v448, 92
  %v484 = vpop.permute.xlu0 %483
  %485 = vrot.lane.b32.xlu0 %v422, 92
  %v486 = vpop.permute.xlu0 %485
  %487 = vrot.lane.b32.xlu0 %v449, 92
  %v488 = vpop.permute.xlu0 %487
  %v489 = vsel %vm107, %v484, %v486
  %v490 = vsel %vm107, %v486, %v488
  %491 = vrot.lane.b32.xlu0 %v458, 91
  %v492 = vpop.permute.xlu0 %491
  %493 = vrot.lane.b32.xlu0 %v438, 91
  %v494 = vpop.permute.xlu0 %493
  %495 = vrot.lane.b32.xlu0 %v448, 91
  %v496 = vpop.permute.xlu0 %495
  %v497 = vsel %vm116, %v492, %v494
  %v498 = vsel %vm116, %v494, %v496
  %499 = vrot.lane.b32.xlu0 %v422, 90
  %v500 = vpop.permute.xlu0 %499
  %501 = vrot.lane.b32.xlu0 %v430, 90
  %v502 = vpop.permute.xlu0 %501
  %503 = vrot.lane.b32.xlu0 %v429, 90
  %v504 = vpop.permute.xlu0 %503
  %v505 = vsel %vm125, %v500, %v502
  %v506 = vsel %vm125, %v502, %v504
  %v509 = vsel %vm128, %v422, %v446
  %v512 = vsel %vm128, %v430, %v447
  %v515 = vsel %vm128, %v429, %v445
  %v517 = vsel %vm138, %v509, %v456
  %v519 = vsel %vm138, %v512, %v457
  %v521 = vsel %vm138, %v515, %v455
  %v523 = vsel %vm145, %v517, %v465
  %v526 = vsel %vm145, %v519, %v466
  %v529 = vsel %vm145, %v521, %v464
  %v533 = vsel %vm128, %v473, %v481
  %v536 = vsel %vm128, %v474, %v482
  %v539 = vsel %vm128, %v472, %v480
  %v541 = vsel %vm138, %v533, %v489
  %v543 = vsel %vm138, %v536, %v490
  %v545 = vsel %vm138, %v539, %v488
  %v547 = vsel %vm145, %v541, %v497
  %v550 = vsel %vm145, %v543, %v498
  %v553 = vsel %vm145, %v545, %v496
  %v556 = vsel %vm128, %v505, 0
  %v559 = vsel %vm128, %v506, 0
  %v562 = vsel %vm128, %v504, 0
  %564 = vmatprep.subr.bf16.mxu0 0
  %565 = vmatpush1.bf16.msra.mxu0 0
  %566 = vmatprep.subr.bf16.mxu0 0
  %567 = vmatpush1.bf16.msra.mxu0 0
  %568 = vmatprep.subr.bf16.mxu0 0
  %569 = vmatpush1.bf16.msra.mxu0 0
  %570 = vmatprep.subr.bf16.mxu0 0
  %571 = vmatpush1.bf16.msra.mxu0 0
  %572 = vmatprep.subr.bf16.mxu0 0
  %573 = vmatpush1.bf16.msra.mxu0 0
  %574 = vmatprep.subr.bf16.mxu0 %v559
  %575 = vmatpush1.bf16.msra.mxu0 %v556
  %576 = vmatprep.subr.bf16.mxu0 %v550
  %577 = vmatpush1.bf16.msra.mxu0 %v547
  %578 = vmatprep.subr.bf16.mxu0 %v526
  %579 = vmatpush1.bf16.msra.mxu0 %v523
  %580 = vmatprep.subr.bf16.mxu0 0
  %581 = vmatpush2.bf16.msra.mxu0 0
  %582 = vmatprep.subr.bf16.mxu0 0
  %583 = vmatpush2.bf16.msra.mxu0 0
  %584 = vmatprep.subr.bf16.mxu0 0
  %585 = vmatpush2.bf16.msra.mxu0 0
  %586 = vmatprep.subr.bf16.mxu0 0
  %587 = vmatpush2.bf16.msra.mxu0 0
  %588 = vmatprep.subr.bf16.mxu0 0
  %589 = vmatpush2.bf16.msra.mxu0 0
  %590 = vmatprep.subr.bf16.mxu0 0
  %591 = vmatpush2.bf16.msra.mxu0 0
  %592 = vmatprep.subr.bf16.mxu0 0
  %593 = vmatpush2.bf16.msra.mxu0 0
  %594 = vmatprep.subr.bf16.mxu0 0
  %595 = vmatpush2.bf16.msra.mxu0 0
  %596 = vmatprep.mubr.bf16.mxu0 0
  %597 = vmatmul.mubr.bf16.gmra.mxu0 %v181
  %v598 = vpop.f32.mrf.mxu0
  %v599 = vadd.f32 0.0, %v598
  %v600 = vpop.f32.mrf.mxu0
  %v601 = vadd.f32 0.0, %v600
  %v602 = vpop.f32.mrf.mxu0
  %v603 = vpop.f32.mrf.mxu0
  %604 = vdwg.mxu0
  %605 = vmatprep.subr.bf16.mxu0 0
  %606 = vmatpush1.bf16.msra.mxu0 0
  %607 = vmatprep.subr.bf16.mxu0 0
  %608 = vmatpush1.bf16.msra.mxu0 0
  %609 = vmatprep.subr.bf16.mxu0 0
  %610 = vmatpush1.bf16.msra.mxu0 0
  %611 = vmatprep.subr.bf16.mxu0 0
  %612 = vmatpush1.bf16.msra.mxu0 0
  %613 = vmatprep.subr.bf16.mxu0 0
  %614 = vmatpush1.bf16.msra.mxu0 0
  %615 = vmatprep.subr.bf16.mxu0 0
  %616 = vmatpush1.bf16.msra.mxu0 %v562
  %617 = vmatprep.subr.bf16.mxu0 0
  %618 = vmatpush1.bf16.msra.mxu0 %v553
  %619 = vmatprep.subr.bf16.mxu0 0
  %620 = vmatpush1.bf16.msra.mxu0 %v529
  %621 = vmatprep.subr.bf16.mxu0 0
  %622 = vmatpush2.bf16.msra.mxu0 0
  %623 = vmatprep.subr.bf16.mxu0 0
  %624 = vmatpush2.bf16.msra.mxu0 0
  %625 = vmatprep.subr.bf16.mxu0 0
  %626 = vmatpush2.bf16.msra.mxu0 0
  %627 = vmatprep.subr.bf16.mxu0 0
  %628 = vmatpush2.bf16.msra.mxu0 0
  %629 = vmatprep.subr.bf16.mxu0 0
  %630 = vmatpush2.bf16.msra.mxu0 0
  %631 = vmatprep.subr.bf16.mxu0 0
  %632 = vmatpush2.bf16.msra.mxu0 0
  %633 = vmatprep.subr.bf16.mxu0 0
  %634 = vmatpush2.bf16.msra.mxu0 0
  %635 = vmatprep.subr.bf16.mxu0 0
  %636 = vmatpush2.bf16.msra.mxu0 0
  %637 = vmatprep.mubr.bf16.mxu0 0
  %638 = vmatmul.mubr.bf16.gmra.mxu0 %v181
  %v639 = vpop.f32.mrf.mxu0
  %v640 = vadd.f32 0.0, %v639
  %v641 = vpop.f32.mrf.mxu0
  %v642 = vpop.f32.mrf.mxu0
  %v643 = vpop.f32.mrf.mxu0
  %644 = vdwg.mxu0
  %v645 = vmul.f32 %v599, %v276
  %v646 = vmul.f32 %v601, %v276
  %v647 = vmul.f32 %v640, %v276
  %v648 = vadd.f32 %v645, %v284
  %v649 = vadd.f32 %v646, %v284
  %v650 = vadd.f32 %v647, %v284
  %v651 = vsel %vm302, %v648, -inf
  %v652 = vsel %vm303, %v649, -inf
  %v653 = vsel %vm304, %v650, -inf
  %657 = vrot.lane.b32.xlu0 %v651, 1
  %v658 = vpop.permute.xlu0 %657
  %659 = vrot.lane.b32.xlu0 %v652, 1
  %v660 = vpop.permute.xlu0 %659
  %661 = vrot.lane.b32.xlu0 %v653, 1
  %v662 = vpop.permute.xlu0 %661
  %v663 = vsel %vm317, %v658, %v660
  %v664 = vsel %vm317, %v660, %v662
  %v668 = vsel %vm317, -inf, %v658
  %v669 = vsel %vm324, %v664, -inf
  %672 = vrot.lane.b32.xlu0 %v668, 127
  %v673 = vpop.permute.xlu0 %672
  %674 = vrot.lane.b32.xlu0 %v663, 127
  %v675 = vpop.permute.xlu0 %674
  %676 = vrot.lane.b32.xlu0 %v669, 127
  %v677 = vpop.permute.xlu0 %676
  %v678 = vsel %vm334, %v673, %v675
  %v679 = vsel %vm334, %v675, %v677
  %v683 = vmax.f32 %v668, %v678
  %v684 = vmax.f32 %v663, %v679
  %v685 = vmax.f32 %v669, %v677
  %686 = vrot.lane.b32.xlu0 %v668, 126
  %v687 = vpop.permute.xlu0 %686
  %688 = vrot.lane.b32.xlu0 %v663, 126
  %v689 = vpop.permute.xlu0 %688
  %690 = vrot.lane.b32.xlu0 %v669, 126
  %v691 = vpop.permute.xlu0 %690
  %v692 = vsel %vm349, %v687, %v689
  %v693 = vsel %vm349, %v689, %v691
  %v697 = vmax.f32 %v683, %v692
  %v698 = vmax.f32 %v684, %v693
  %v699 = vmax.f32 %v685, %v691
  %703 = vrot.lane.b32.xlu0 %v697, 18
  %v704 = vpop.permute.xlu0 %703
  %705 = vrot.lane.b32.xlu0 %v698, 18
  %v706 = vpop.permute.xlu0 %705
  %707 = vrot.lane.b32.xlu0 %v699, 18
  %v708 = vpop.permute.xlu0 %707
  %v709 = vsel %vm367, %v704, %v706
  %v710 = vsel %vm367, %v706, %v708
  %v714 = vsel %vm367, -inf, %v704
  %v715 = vsel %vm374, %v710, -inf
  %718 = vrot.lane.b32.xlu0 %v714, 110
  %v719 = vpop.permute.xlu0 %718
  %720 = vrot.lane.b32.xlu0 %v709, 110
  %v721 = vpop.permute.xlu0 %720
  %722 = vrot.lane.b32.xlu0 %v715, 110
  %v723 = vpop.permute.xlu0 %722
  %v724 = vsel %vm384, %v719, %v721
  %v725 = vsel %vm384, %v721, %v723
  %v729 = vmax.f32 %v714, %v724
  %v730 = vmax.f32 %v709, %v725
  %v731 = vmax.f32 %v715, %v723
  %732 = vrot.lane.b32.xlu0 %v714, 92
  %v733 = vpop.permute.xlu0 %732
  %734 = vrot.lane.b32.xlu0 %v709, 92
  %v735 = vpop.permute.xlu0 %734
  %736 = vrot.lane.b32.xlu0 %v715, 92
  %v737 = vpop.permute.xlu0 %736
  %v738 = vsel %vm399, %v733, %v735
  %v739 = vsel %vm399, %v735, %v737
  %v743 = vmax.f32 %v729, %v738
  %v744 = vmax.f32 %v730, %v739
  %v745 = vmax.f32 %v731, %v737
  %s746 = scalar_lea.vmem %s5, 24
  %747 = vst [vmem:[%s746] sm:$0xff] %v743
  %748 = vst [vmem:[%s746 + $0x8] sm:$0xff] %v744
  %749 = vst.msk [vmem:[%s746 + $0x10] sm:$0xff] %vm410, %v745
  // Predicated region
  $region22: #{conv_block.3} parent=0 // pred_check
    _
  $region23: #{conv_block.3} parent=0 // pred_check_branch
    %751 = sbr.rel (0) target = $region25
  $region24: #{conv_block.3} parent=0 // pred_region
    _
  $region25: #{conv_block.3} parent=0 // pred_fallthru
    _
  // Predicated region
  $region26: #{conv_block.3} parent=0 // pred_check
    _
  $region27: #{conv_block.3} parent=0 // pred_check_branch
    %753 = sbr.rel (0) target = $region29
  $region28: #{conv_block.3} parent=0 // pred_region
    _
  $region29: #{conv_block.3} parent=0 // pred_fallthru
    _

</llo_original>
